<compile_context>
chip_gen: v7x
topology: tpu7x:2x2x1
jax: 0.10.0
libtpu: 0.0.40
codegen_flags: <defaults>
</compile_context>

<pallas_src>
import functools

import jax
import jax.numpy as jnp
from jax.experimental import pallas as pl
from jax.experimental.pallas import tpu as pltpu

FEAT = 512          # features per backbone
CAT = 2 * FEAT      # concatenated feature width (1024)
NC_PAD = 128        # lane-dense padded classifier width


def ensemble_kernel(x_ref, w1_ref, b1_ref, wc_ref, bc_ref, out_ref, h_acc):
    # x_ref  : [B, tk]        bf16   (K-tile of flattened input)
    # w1_ref : [tk, 1024]     bf16   (K-tile of fused backbone weight [wa|wb])
    # b1_ref : [1, 1024]      f32    (fused backbone bias, resident)
    # wc_ref : [1024, NC_PAD] f32    (classifier weight, resident)
    # bc_ref : [1, NC_PAD]    f32
    # out_ref: [B, NC_PAD]    f32
    # h_acc  : [B, 1024]      f32 VMEM accumulator (persists across grid steps)
    k = pl.program_id(0)

    @pl.when(k == 0)
    def _():
        h_acc[...] = jnp.zeros_like(h_acc)

    # fused backbone: h = x @ [Wa | Wb]   (bf16 inputs, f32 accumulation)
    h_acc[...] += jnp.dot(x_ref[...], w1_ref[...],
                          preferred_element_type=jnp.float32)

    @pl.when(k == pl.num_programs(0) - 1)
    def _():
        # classifier(cat((h1, h2), dim=1)) == (h + b1) @ Wc.T + bc
        h = h_acc[...] + b1_ref[...]
        out = jnp.dot(h, wc_ref[...],
                      preferred_element_type=jnp.float32) + bc_ref[...]
        out_ref[...] = out.astype(out_ref.dtype)


def prepare_kernel_params(params, *, tk=512):
    """One-time (off the per-call critical path) weight prep:
    fuse, transpose, pad and cast the PyTorch-layout parameters."""
    wa = params["wa"]                       # [512, Din]   (PyTorch [out, in])
    wb = params["wb"]                       # [512, Din]
    wc = params["wc"]                       # [NC, 1024]
    din = wa.shape[1]
    nc = wc.shape[0]
    din_pad = pl.cdiv(din, tk) * tk

    # fused backbone weight: [Din_pad, 1024] bf16  (columns 0:512 = A, 512: = B)
    w1 = jnp.concatenate([wa, wb], axis=0).T            # [Din, 1024] f32
    if din_pad != din:
        w1 = jnp.pad(w1, ((0, din_pad - din), (0, 0)))
    w1 = w1.astype(jnp.bfloat16)
    b1 = jnp.concatenate([params["ba"], params["bb"]]).reshape(1, CAT)
    b1 = b1.astype(jnp.float32)

    # classifier, transposed and zero-padded to a lane-dense NC_PAD width
    wc_t = jnp.zeros((CAT, NC_PAD), jnp.float32).at[:, :nc].set(wc.T)
    bc = jnp.zeros((1, NC_PAD), jnp.float32).at[0, :nc].set(params["bc"])
    return {"w1": w1, "b1": b1, "wc": wc_t, "bc": bc}


def my_ensemble_forward(x_nchw, kp, *, nb_classes, tk=512):
    """x_nchw: [B, C, H, W] float32; kp: output of prepare_kernel_params.
    Returns [B, nb_classes] float32."""
    B = x_nchw.shape[0]
    x = x_nchw.reshape(B, -1)                            # flatten (view)
    din = x.shape[1]
    din_pad = kp["w1"].shape[0]
    if din_pad != din:
        x = jnp.pad(x, ((0, 0), (0, din_pad - din)))
    x = x.astype(jnp.bfloat16)
    nk = din_pad // tk
    nc_pad = kp["wc"].shape[1]

    out_padded = pl.pallas_call(
        ensemble_kernel,
        out_shape=jax.ShapeDtypeStruct((B, nc_pad), jnp.float32),
        grid_spec=pltpu.PrefetchScalarGridSpec(
            num_scalar_prefetch=0,
            grid=(nk,),
            in_specs=[
                pl.BlockSpec((B, tk), lambda k: (0, k)),          # x K-tile
                pl.BlockSpec((tk, CAT), lambda k: (k, 0)),        # W1 K-tile
                pl.BlockSpec((1, CAT), lambda k: (0, 0)),         # b1 (resident)
                pl.BlockSpec((CAT, nc_pad), lambda k: (0, 0)),    # Wc (resident)
                pl.BlockSpec((1, nc_pad), lambda k: (0, 0)),      # bc (resident)
            ],
            out_specs=pl.BlockSpec((B, nc_pad), lambda k: (0, 0)),
            scratch_shapes=[pltpu.VMEM((B, CAT), jnp.float32)],
        ),
        compiler_params=pltpu.CompilerParams(
            dimension_semantics=("arbitrary",),
        ),
        cost_estimate=pl.CostEstimate(
            flops=2 * B * din_pad * CAT + 2 * B * CAT * nc_pad,
            transcendentals=0,
            bytes_accessed=(x.size * 2            # bf16 input
                            + kp["w1"].size * 2   # bf16 fused weight
                            + kp["wc"].size * 4
                            + kp["b1"].size * 4 + kp["bc"].size * 4
                            + B * nc_pad * 4),
        ),
    )(x, kp["w1"], kp["b1"], kp["wc"], kp["bc"])

    return out_padded[:, :nb_classes]


def init_params(key, din, nb_classes=10):
    kA, kB, kC, kbA, kbB, kbC = jax.random.split(key, 6)
    scale_in = 1.0 / jnp.sqrt(din)
    scale_cat = 1.0 / jnp.sqrt(1024.0)
    return {
        # backbone A / B: Linear(din -> 512), PyTorch layout [out, in]
        "wa": jax.random.uniform(kA, (FEAT, din), jnp.float32, -scale_in, scale_in),
        "ba": jax.random.uniform(kbA, (FEAT,), jnp.float32, -scale_in, scale_in),
        "wb": jax.random.uniform(kB, (FEAT, din), jnp.float32, -scale_in, scale_in),
        "bb": jax.random.uniform(kbB, (FEAT,), jnp.float32, -scale_in, scale_in),
        # classifier: Linear(512 + 512 -> nb_classes)
        "wc": jax.random.uniform(kC, (nb_classes, CAT), jnp.float32, -scale_cat, scale_cat),
        "bc": jax.random.uniform(kbC, (nb_classes,), jnp.float32, -scale_cat, scale_cat),
    }


if __name__ == "__main__":
    key = jax.random.PRNGKey(0)
    kx, kparam = jax.random.split(key)

    B, C, H, W = 2, 4, 16, 16            # input [2, 4, 16, 16] NCHW
    NB_CLASSES = 10
    TK = 512                             # Din = 1024 -> 2 pipelined K-steps

    x = jax.random.normal(kx, (B, C, H, W), jnp.float32)
    params = init_params(kparam, din=C * H * W, nb_classes=NB_CLASSES)

    # one-time weight prep (fuse / transpose / pad / bf16) off the hot path
    kparams = prepare_kernel_params(params, tk=TK)
    kparams = jax.tree_util.tree_map(jax.block_until_ready, kparams)

    fwd = jax.jit(functools.partial(my_ensemble_forward,
                                    nb_classes=NB_CLASSES, tk=TK))
    out = fwd(x, kparams)
    jax.block_until_ready(out)

    # reference in plain JAX, using the same bf16-rounded backbone inputs
    xf = x.reshape(B, -1)
    xb = xf.astype(jnp.bfloat16).astype(jnp.float32)
    wab = params["wa"].astype(jnp.bfloat16).astype(jnp.float32)
    wbb = params["wb"].astype(jnp.bfloat16).astype(jnp.float32)
    h1 = xb @ wab.T + params["ba"]
    h2 = xb @ wbb.T + params["bb"]
    ref = jnp.concatenate([h1, h2], axis=1) @ params["wc"].T + params["bc"]

    assert out.shape == (B, NB_CLASSES)
    assert jnp.allclose(out, ref, atol=1e-2, rtol=1e-2), \
        float(jnp.max(jnp.abs(out - ref)))

    print("KERNEL_OK")
</pallas_src>

<mosaic_0001>
module attributes {stable_mosaic.version = 11 : i64} {
  func.func @ensemble_kernel(%arg0: i32, %arg1: memref<2x512xbf16, #tpu.memory_space<vmem>>, %arg2: memref<512x1024xbf16, #tpu.memory_space<vmem>>, %arg3: memref<1x1024xf32, #tpu.memory_space<vmem>>, %arg4: memref<1024x128xf32, #tpu.memory_space<vmem>>, %arg5: memref<1x128xf32, #tpu.memory_space<vmem>>, %arg6: memref<2x128xf32, #tpu.memory_space<vmem>>, %arg7: memref<2x1024xf32, #tpu.memory_space<vmem>>) attributes {dimension_semantics = [#tpu.dimension_semantics<arbitrary>], iteration_bounds = array<i64: 2>, scalar_prefetch = 0 : i64, scratch_operands = 1 : i64, tpu.core_type = #tpu.core_type<tc>, window_params = [{transform_indices = @transform_0, window_bounds = array<i64: 2, 512>}, {transform_indices = @transform_1, window_bounds = array<i64: 512, 1024>}, {pipeline_mode = #tpu.pipeline_mode<synchronous>, transform_indices = @transform_2, window_bounds = array<i64: 1, 1024>}, {pipeline_mode = #tpu.pipeline_mode<synchronous>, transform_indices = @transform_3, window_bounds = array<i64: 1024, 128>}, {pipeline_mode = #tpu.pipeline_mode<synchronous>, transform_indices = @transform_4, window_bounds = array<i64: 1, 128>}, {pipeline_mode = #tpu.pipeline_mode<synchronous>, transform_indices = @transform_5, window_bounds = array<i64: 2, 128>}]} {
    %c0_i32 = arith.constant 0 : i32
    %0 = arith.cmpi eq, %arg0, %c0_i32 : i32
    %1 = arith.extui %0 : i1 to i32
    %c0_i32_0 = arith.constant 0 : i32
    %2 = arith.cmpi ne, %1, %c0_i32_0 : i32
    scf.if %2 {
      %cst_9 = arith.constant 0.000000e+00 : f32
      %12 = vector.broadcast %cst_9 : f32 to vector<2x1024xf32>
      %c0_10 = arith.constant 0 : index
      %c0_11 = arith.constant 0 : index
      %13 = vector.load %arg7[%c0_10, %c0_11] : memref<2x1024xf32, #tpu.memory_space<vmem>>, vector<2x1024xf32>
      tpu.vector_store %arg7[%c0_10, %c0_11], %12 {strides = array<i32>} : memref<2x1024xf32, #tpu.memory_space<vmem>>, vector<2x1024xf32>,
    } else {
    }
    %c0 = arith.constant 0 : index
    %c0_1 = arith.constant 0 : index
    %3 = vector.load %arg7[%c0, %c0_1] : memref<2x1024xf32, #tpu.memory_space<vmem>>, vector<2x1024xf32>
    %c0_2 = arith.constant 0 : index
    %c0_3 = arith.constant 0 : index
    %4 = vector.load %arg1[%c0_2, %c0_3] : memref<2x512xbf16, #tpu.memory_space<vmem>>, vector<2x512xbf16>
    %c0_4 = arith.constant 0 : index
    %c0_5 = arith.constant 0 : index
    %5 = vector.load %arg2[%c0_4, %c0_5] : memref<512x1024xbf16, #tpu.memory_space<vmem>>, vector<512x1024xbf16>
    %cst = arith.constant dense<0.000000e+00> : vector<2x1024xf32>
    %6 = tpu.matmul %4, %5, %cst {dimension_numbers = #tpu.dot_dimension_numbers<[1], [0], [0], [1], [0, 0, 1, 1], [], []>} : vector<2x512xbf16>, vector<512x1024xbf16>, vector<2x1024xf32> -> vector<2x1024xf32>
    %7 = arith.addf %3, %6 : vector<2x1024xf32>
    %c0_6 = arith.constant 0 : index
    %c0_7 = arith.constant 0 : index
    %8 = vector.load %arg7[%c0_6, %c0_7] : memref<2x1024xf32, #tpu.memory_space<vmem>>, vector<2x1024xf32>
    tpu.vector_store %arg7[%c0_6, %c0_7], %7 {strides = array<i32>} : memref<2x1024xf32, #tpu.memory_space<vmem>>, vector<2x1024xf32>,
    %c1_i32 = arith.constant 1 : i32
    %9 = arith.cmpi eq, %arg0, %c1_i32 : i32
    %10 = arith.extui %9 : i1 to i32
    %c0_i32_8 = arith.constant 0 : i32
    %11 = arith.cmpi ne, %10, %c0_i32_8 : i32
    scf.if %11 {
      %c0_9 = arith.constant 0 : index
      %c0_10 = arith.constant 0 : index
      %12 = vector.load %arg7[%c0_9, %c0_10] : memref<2x1024xf32, #tpu.memory_space<vmem>>, vector<2x1024xf32>
      %c0_11 = arith.constant 0 : index
      %c0_12 = arith.constant 0 : index
      %13 = vector.load %arg3[%c0_11, %c0_12] : memref<1x1024xf32, #tpu.memory_space<vmem>>, vector<1x1024xf32>
      %14 = vector.broadcast %13 : vector<1x1024xf32> to vector<2x1024xf32>
      %15 = arith.addf %12, %14 : vector<2x1024xf32>
      %c0_13 = arith.constant 0 : index
      %c0_14 = arith.constant 0 : index
      %16 = vector.load %arg4[%c0_13, %c0_14] : memref<1024x128xf32, #tpu.memory_space<vmem>>, vector<1024x128xf32>
      %cst_15 = arith.constant dense<0.000000e+00> : vector<2x128xf32>
      %17 = tpu.matmul %15, %16, %cst_15 {dimension_numbers = #tpu.dot_dimension_numbers<[1], [0], [0], [1], [0, 0, 1, 1], [], []>} : vector<2x1024xf32>, vector<1024x128xf32>, vector<2x128xf32> -> vector<2x128xf32>
      %c0_16 = arith.constant 0 : index
      %c0_17 = arith.constant 0 : index
      %18 = vector.load %arg5[%c0_16, %c0_17] : memref<1x128xf32, #tpu.memory_space<vmem>>, vector<1x128xf32>
      %19 = vector.broadcast %18 : vector<1x128xf32> to vector<2x128xf32>
      %20 = arith.addf %17, %19 : vector<2x128xf32>
      %c0_18 = arith.constant 0 : index
      %c0_19 = arith.constant 0 : index
      %21 = vector.load %arg6[%c0_18, %c0_19] : memref<2x128xf32, #tpu.memory_space<vmem>>, vector<2x128xf32>
      tpu.vector_store %arg6[%c0_18, %c0_19], %20 {strides = array<i32>} : memref<2x128xf32, #tpu.memory_space<vmem>>, vector<2x128xf32>,
    } else {
    }
    return
  }
  func.func @transform_0(%arg0: i32) -> (i32, i32) {
    %c0_i32 = arith.constant 0 : i32
    %c0_i32_0 = arith.constant 0 : i32
    return %c0_i32, %arg0 : i32, i32
  }
  func.func @transform_1(%arg0: i32) -> (i32, i32) {
    %c0_i32 = arith.constant 0 : i32
    %c0_i32_0 = arith.constant 0 : i32
    return %arg0, %c0_i32 : i32, i32
  }
  func.func @transform_2(%arg0: i32) -> (i32, i32) {
    %c0_i32 = arith.constant 0 : i32
    %c0_i32_0 = arith.constant 0 : i32
    %c0_i32_1 = arith.constant 0 : i32
    return %c0_i32, %c0_i32_0 : i32, i32
  }
  func.func @transform_3(%arg0: i32) -> (i32, i32) {
    %c0_i32 = arith.constant 0 : i32
    %c0_i32_0 = arith.constant 0 : i32
    %c0_i32_1 = arith.constant 0 : i32
    return %c0_i32, %c0_i32_0 : i32, i32
  }
  func.func @transform_4(%arg0: i32) -> (i32, i32) {
    %c0_i32 = arith.constant 0 : i32
    %c0_i32_0 = arith.constant 0 : i32
    %c0_i32_1 = arith.constant 0 : i32
    return %c0_i32, %c0_i32_0 : i32, i32
  }
  func.func @transform_5(%arg0: i32) -> (i32, i32) {
    %c0_i32 = arith.constant 0 : i32
    %c0_i32_0 = arith.constant 0 : i32
    %c0_i32_1 = arith.constant 0 : i32
    return %c0_i32, %c0_i32_0 : i32, i32
  }
}

</mosaic_0001>

<llo_original>
// kernel: my_ensemble_forward.1
$region0: #{my_ensemble_forward.1}
  #allocation0 [shape = 'u32[]', space=smem, size = 0x4, offset = 0x4, fixed_abs, tag = 'smem constant byte address 0x4 - core index']
  #allocation1 [shape = 'u32[144,128]{1,0:T(1,128)}', space=vmem, size = 0x12000, scoped, tag = 'internal scratch']
  #allocation2 [shape = 'f32[2,1024]{1,0:T(2,128)}', space=vmem, size = 0x2000, scoped, tag = 'scratch operand']
  %s0 = inlined_call_operand.vmem [shape: bf16[2,1024], index: 0, kind: input, shape index: {}]
  %s1 = inlined_call_operand.hbm [shape: bf16[1024,1024], index: 1, kind: input, shape index: {}]
  %s2 = inlined_call_operand.hbm [shape: f32[1,1024], index: 2, kind: input, shape index: {}]
  %s3 = inlined_call_operand.hbm [shape: f32[1024,128], index: 3, kind: input, shape index: {}]
  %s4 = inlined_call_operand.hbm [shape: f32[1,128], index: 4, kind: input, shape index: {}]
  %s5 = inlined_call_operand.hbm [shape: f32[2,128], index: 5, kind: output, shape index: {}]
  %s6 = sld [smem:[#allocation0]]
  $region77: #{my_ensemble_forward.1} parent=0
    _
  %s8 = ssub.s32 1, %s6
  %s9 = scalar_select 0, %s8, %s6
  $region1: #{my_ensemble_forward.1} parent=0
    #allocation3 [shape = 'u8[2097152]{0}', space=vmem, size = 0x200000, scoped, tag = 'input window, operand 1']
    #allocation4 [shape = 's32[2]{0}', space=sflag, size = 0x8, scoped, tag = 'scoped memory for my_ensemble_forward.1']
    #allocation5 [shape = 's32[2]{0}', space=sflag, size = 0x8, scoped, tag = 'scoped memory for my_ensemble_forward.1']
    #allocation6 [shape = 'u8[4096]{0}', space=vmem, size = 0x1000, scoped, tag = 'input window, operand 2, single buffered']
    #allocation7 [shape = 's32[1]{0}', space=sflag, size = 0x4, scoped, tag = 'scoped memory for my_ensemble_forward.1']
    #allocation8 [shape = 'u8[524288]{0}', space=vmem, size = 0x80000, scoped, tag = 'input window, operand 3, single buffered']
    #allocation9 [shape = 'u8[512]{0}', space=vmem, size = 0x400, scoped, tag = 'input window, operand 4, single buffered']
    #allocation10 [shape = 's32[1]{0}', space=sflag, size = 0x4, scoped, tag = 'scoped memory for my_ensemble_forward.1']
    #allocation11 [shape = 'u8[1024]{0}', space=vmem, size = 0x400, scoped, tag = 'output window, operand 0, single buffered']
    %10 = vsyncpa [#allocation4], 0
    %s11 = scalar_lea.sflag [#allocation4], 1
    %12 = vsyncpa %s11, 0
    %13 = vsyncpa [#allocation7], 0
    %14 = vsyncpa [#allocation10], 0
    %15 = vsyncpa [#allocation5], 0
    loop: start=0, step=1, limit=4
    $region2: #{my_ensemble_forward.1} parent=1 // loop_pre_header
      _
    $region3: #{my_ensemble_forward.1} parent=1 // loop_header
      %s17 = sphi 0, %s21
      %p18 = scmp.ge.s32.totalorder %s17, 4
      %s27 = sphi 0, %s29
      %s30 = sphi 0, %s27
      %s31 = sphi 0, %s30
      %s47 = sphi 0, %s31
      %s53 = sphi 0, %s55
      %s56 = sphi 0, %s53
      %s57 = sphi 0, %s56
      %s73 = sphi 0, %s57
      %s77 = sphi 0, %s77
      %s79 = sphi 0, %s77
      %s80 = sphi 0, %s79
      %s94 = sphi 0, %s80
      %s98 = sphi 0, %s98
      %s100 = sphi 0, %s98
      %s101 = sphi 0, %s100
      %s115 = sphi 0, %s101
      %s119 = sphi 0, %s119
      %s121 = sphi 0, %s119
      %s122 = sphi 0, %s121
      %s136 = sphi 0, %s122
      %s140 = sphi 0, %s140
      %s142 = sphi 0, %s140
      %s143 = sphi 0, %s142
      %s157 = sphi 0, %s143
    $region4: #{my_ensemble_forward.1} parent=1 // loop_header_branch
      %20 = sbr.rel (%p18) target = $region8
    $region5: #{my_ensemble_forward.1} parent=1 // loop_body
      %s22 = ssub.s32 %s17, 1
      %s23 = ssub.s32 %s17, 2
      %s24 = sadd.s32 %s17, 1
      %s25 = ssub.s32 %s17, %s24
      %p26 = scmp.eq.s32.totalorder %s25, 0
      %s28 = sadd.s32 %s27, 1
      %s29 = scalar_select %p26, %s27, %s28
      %p32 = pneg %p26
      %p33 = scmp.eq.s32.totalorder %s17, 1
      %p34 = por %p32, %p33
      %p35 = scmp.ne.s32.totalorder %s27, %s30
      %p36 = scmp.eq.s32.totalorder %s17, 0
      %p37 = por %p35, %p36
      %p38 = scmp.ne.s32.totalorder %s27, %s30
      %p39 = scmp.eq.s32.totalorder %s22, 1
      %p40 = por %p38, %p39
      %p41 = scmp.ne.s32.totalorder %s30, %s31
      %p42 = scmp.eq.s32.totalorder %s22, 0
      %p43 = por %p41, %p42
      %p44 = scmp.ne.s32.totalorder %s30, %s31
      %p45 = scmp.eq.s32.totalorder %s23, 1
      %p46 = por %p44, %p45
      %p48 = scmp.ne.s32.totalorder %s31, %s47
      %p49 = scmp.eq.s32.totalorder %s23, 0
      %p50 = por %p48, %p49
      %s51 = ssub.s32 %s17, %s24
      %p52 = scmp.eq.s32.totalorder %s51, 0
      %s54 = sadd.s32 %s53, 1
      %s55 = scalar_select %p52, %s53, %s54
      %p58 = pneg %p52
      %p59 = scmp.eq.s32.totalorder %s17, 1
      %p60 = por %p58, %p59
      %p61 = scmp.ne.s32.totalorder %s53, %s56
      %p62 = scmp.eq.s32.totalorder %s17, 0
      %p63 = por %p61, %p62
      %p64 = scmp.ne.s32.totalorder %s53, %s56
      %p65 = scmp.eq.s32.totalorder %s22, 1
      %p66 = por %p64, %p65
      %p67 = scmp.ne.s32.totalorder %s56, %s57
      %p68 = scmp.eq.s32.totalorder %s22, 0
      %p69 = por %p67, %p68
      %p70 = scmp.ne.s32.totalorder %s56, %s57
      %p71 = scmp.eq.s32.totalorder %s23, 1
      %p72 = por %p70, %p71
      %p74 = scmp.ne.s32.totalorder %s57, %s73
      %p75 = scmp.eq.s32.totalorder %s23, 0
      %p76 = por %p74, %p75
      %s78 = sadd.s32 %s77, 1
      %p81 = scmp.eq.s32.totalorder %s17, 1
      %p82 = scmp.ne.s32.totalorder %s77, %s79
      %p83 = scmp.eq.s32.totalorder %s17, 0
      %p84 = por %p82, %p83
      %p85 = scmp.ne.s32.totalorder %s77, %s79
      %p86 = scmp.eq.s32.totalorder %s22, 1
      %p87 = por %p85, %p86
      %p88 = scmp.ne.s32.totalorder %s79, %s80
      %p89 = scmp.eq.s32.totalorder %s22, 0
      %p90 = por %p88, %p89
      %p91 = scmp.ne.s32.totalorder %s79, %s80
      %p92 = scmp.eq.s32.totalorder %s23, 1
      %p93 = por %p91, %p92
      %p95 = scmp.ne.s32.totalorder %s80, %s94
      %p96 = scmp.eq.s32.totalorder %s23, 0
      %p97 = por %p95, %p96
      %s99 = sadd.s32 %s98, 1
      %p102 = scmp.eq.s32.totalorder %s17, 1
      %p103 = scmp.ne.s32.totalorder %s98, %s100
      %p104 = scmp.eq.s32.totalorder %s17, 0
      %p105 = por %p103, %p104
      %p106 = scmp.ne.s32.totalorder %s98, %s100
      %p107 = scmp.eq.s32.totalorder %s22, 1
      %p108 = por %p106, %p107
      %p109 = scmp.ne.s32.totalorder %s100, %s101
      %p110 = scmp.eq.s32.totalorder %s22, 0
      %p111 = por %p109, %p110
      %p112 = scmp.ne.s32.totalorder %s100, %s101
      %p113 = scmp.eq.s32.totalorder %s23, 1
      %p114 = por %p112, %p113
      %p116 = scmp.ne.s32.totalorder %s101, %s115
      %p117 = scmp.eq.s32.totalorder %s23, 0
      %p118 = por %p116, %p117
      %s120 = sadd.s32 %s119, 1
      %p123 = scmp.eq.s32.totalorder %s17, 1
      %p124 = scmp.ne.s32.totalorder %s119, %s121
      %p125 = scmp.eq.s32.totalorder %s17, 0
      %p126 = por %p124, %p125
      %p127 = scmp.ne.s32.totalorder %s119, %s121
      %p128 = scmp.eq.s32.totalorder %s22, 1
      %p129 = por %p127, %p128
      %p130 = scmp.ne.s32.totalorder %s121, %s122
      %p131 = scmp.eq.s32.totalorder %s22, 0
      %p132 = por %p130, %p131
      %p133 = scmp.ne.s32.totalorder %s121, %s122
      %p134 = scmp.eq.s32.totalorder %s23, 1
      %p135 = por %p133, %p134
      %p137 = scmp.ne.s32.totalorder %s122, %s136
      %p138 = scmp.eq.s32.totalorder %s23, 0
      %p139 = por %p137, %p138
      %s141 = sadd.s32 %s140, 1
      %p144 = scmp.eq.s32.totalorder %s17, 1
      %p145 = scmp.ne.s32.totalorder %s140, %s142
      %p146 = scmp.eq.s32.totalorder %s17, 0
      %p147 = por %p145, %p146
      %p148 = scmp.ne.s32.totalorder %s140, %s142
      %p149 = scmp.eq.s32.totalorder %s22, 1
      %p150 = por %p148, %p149
      %p151 = scmp.ne.s32.totalorder %s142, %s143
      %p152 = scmp.eq.s32.totalorder %s22, 0
      %p153 = por %p151, %p152
      %p154 = scmp.ne.s32.totalorder %s142, %s143
      %p155 = scmp.eq.s32.totalorder %s23, 1
      %p156 = por %p154, %p155
      %p158 = scmp.ne.s32.totalorder %s143, %s157
      %p159 = scmp.eq.s32.totalorder %s23, 0
      %p160 = por %p158, %p159
      %p161 = scmp.le.s32.totalorder 1, %s17
      %p162 = scmp.lt.s32.totalorder %s17, 3
      %p163 = pnand %p161, %p162
      %p164 = pneg %p163
      // Predicated region
      $region9: #{my_ensemble_forward.1} parent=5 // pred_check
        _
      $region10: #{my_ensemble_forward.1} parent=5 // pred_check_branch
        %166 = sbr.rel (%p163) target = $region12
      $region11: #{my_ensemble_forward.1} parent=5 // pred_region
        %s167 = ssub.s32 %s17, 1
        // Predicated region
        $region13: #{my_ensemble_forward.1} parent=11 // pred_check
          %p168 = pneg %p90
        $region14: #{my_ensemble_forward.1} parent=11 // pred_check_branch
          %170 = sbr.rel (%p168) target = $region16
        $region15: #{my_ensemble_forward.1} parent=11 // pred_region
          %s172 = ssub.s32 128, 128
          %173 = vsyncadd [#allocation7], %s172
          %s175 = sshll.u32 [#allocation6], 4
          %s176 = int_to_ptr.vmem [resolvable:$true] %s175
          %178 = dma.hbm_to_vmem [thread:$0]  %s2, 128, %s176, [#allocation7]
        $region16: #{my_ensemble_forward.1} parent=11 // pred_fallthru
          _
        // Predicated region
        $region17: #{my_ensemble_forward.1} parent=11 // pred_check
          %p179 = pneg %p111
        $region18: #{my_ensemble_forward.1} parent=11 // pred_check_branch
          %181 = sbr.rel (%p179) target = $region20
        $region19: #{my_ensemble_forward.1} parent=11 // pred_region
          %s183 = ssub.s32 16384, 16384
          %184 = vsyncadd [#allocation7], %s183
          %s185 = sshll.u32 [#allocation8], 4
          %s186 = int_to_ptr.vmem [resolvable:$true] %s185
          %191 = dma.hbm_to_vmem [thread:$0]  %s3, 16384, %s186, [#allocation7], 128, 128, 8
        $region20: #{my_ensemble_forward.1} parent=11 // pred_fallthru
          _
        // Predicated region
        $region21: #{my_ensemble_forward.1} parent=11 // pred_check
          %p192 = pneg %p132
        $region22: #{my_ensemble_forward.1} parent=11 // pred_check_branch
          %194 = sbr.rel (%p192) target = $region24
        $region23: #{my_ensemble_forward.1} parent=11 // pred_region
          %s196 = ssub.s32 16, 16
          %197 = vsyncadd [#allocation10], %s196
          %s199 = sshll.u32 [#allocation9], 4
          %s200 = int_to_ptr.vmem [resolvable:$true] %s199
          %202 = dma.hbm_to_vmem [thread:$0]  %s4, 16, %s200, [#allocation10]
        $region24: #{my_ensemble_forward.1} parent=11 // pred_fallthru
          _
      $region12: #{my_ensemble_forward.1} parent=5 // pred_fallthru
        _
      %p203 = scmp.lt.s32.totalorder %s17, 2
      // Predicated region
      $region25: #{my_ensemble_forward.1} parent=5 // pred_check
        %p204 = pneg %p203
      $region26: #{my_ensemble_forward.1} parent=5 // pred_check_branch
        %206 = sbr.rel (%p204) target = $region28
      $region27: #{my_ensemble_forward.1} parent=5 // pred_region
        // Predicated region
        $region29: #{my_ensemble_forward.1} parent=27 // pred_check
          %p207 = pneg %p37
        $region30: #{my_ensemble_forward.1} parent=27 // pred_check_branch
          %209 = sbr.rel (%p207) target = $region32
        $region31: #{my_ensemble_forward.1} parent=27 // pred_region
          %s210 = smul.u32 4, %s17
          %p211 = scmp.lt.s32.totalorder %s210, 7
          %s212 = scalar_select %p211, %s210, 7
          %s213 = scalar_lea.vmem %s0, %s212
          %s214 = smul.u32 4, %s17
        $region32: #{my_ensemble_forward.1} parent=27 // pred_fallthru
          _
        // Predicated region
        $region33: #{my_ensemble_forward.1} parent=27 // pred_check
          %p215 = pneg %p63
        $region34: #{my_ensemble_forward.1} parent=27 // pred_check_branch
          %217 = sbr.rel (%p215) target = $region36
        $region35: #{my_ensemble_forward.1} parent=27 // pred_region
          %s218 = sand.u32 %s53, 1
          %s219 = scalar_lea.sflag [#allocation4], %s218
          %s220 = sand.u32 %s53, 1
          %s221 = smul.addr %s220, 2048
          %s222 = scalar_lea.vmem [#allocation3], %s221
          %s223 = smul.u32 64, %s17
          %s225 = ssub.s32 32768, 32768
          %226 = vsyncadd %s219, %s225
          %s227 = smul.addr %s223, 8
          %s228 = smul.addr %s227, 64
          %s229 = scalar_lea.hbm %s1, %s228
          %s230 = sshll.u32 %s222, 4
          %s231 = int_to_ptr.vmem [resolvable:$true] %s230
          %236 = dma.hbm_to_vmem [thread:$0]  %s229, 32768, %s231, %s219, 512, 512, 32
        $region36: #{my_ensemble_forward.1} parent=27 // pred_fallthru
          _
      $region28: #{my_ensemble_forward.1} parent=5 // pred_fallthru
        _
      %p237 = scmp.le.s32.totalorder 1, %s17
      %p238 = scmp.lt.s32.totalorder %s17, 3
      %p239 = pnand %p237, %p238
      %p240 = pneg %p239
      // Predicated region
      $region37: #{my_ensemble_forward.1} parent=5 // pred_check
        _
      $region38: #{my_ensemble_forward.1} parent=5 // pred_check_branch
        %242 = sbr.rel (%p239) target = $region40
      $region39: #{my_ensemble_forward.1} parent=5 // pred_region
        %s243 = ssub.s32 %s17, 1
        %s244 = sand.u32 %s56, 1
        %s245 = scalar_lea.sflag [#allocation4], %s244
        %s246 = sand.u32 %s56, 1
        %s247 = smul.addr %s246, 2048
        %s248 = scalar_lea.vmem [#allocation3], %s247
        // Predicated region
        $region41: #{my_ensemble_forward.1} parent=39 // pred_check
          %p249 = pneg %p69
        $region42: #{my_ensemble_forward.1} parent=39 // pred_check_branch
          %251 = sbr.rel (%p249) target = $region44
        $region43: #{my_ensemble_forward.1} parent=39 // pred_region
          %252 = dma.done %s245, 32768
        $region44: #{my_ensemble_forward.1} parent=39 // pred_fallthru
          _
        // Predicated region
        $region45: #{my_ensemble_forward.1} parent=39 // pred_check
          %p253 = pneg %p90
        $region46: #{my_ensemble_forward.1} parent=39 // pred_check_branch
          %255 = sbr.rel (%p253) target = $region48
        $region47: #{my_ensemble_forward.1} parent=39 // pred_region
          %256 = dma.done [#allocation7], 128
        $region48: #{my_ensemble_forward.1} parent=39 // pred_fallthru
          _
        // Predicated region
        $region49: #{my_ensemble_forward.1} parent=39 // pred_check
          %p257 = pneg %p111
        $region50: #{my_ensemble_forward.1} parent=39 // pred_check_branch
          %259 = sbr.rel (%p257) target = $region52
        $region51: #{my_ensemble_forward.1} parent=39 // pred_region
          %260 = dma.done [#allocation7], 16384
        $region52: #{my_ensemble_forward.1} parent=39 // pred_fallthru
          _
        // Predicated region
        $region53: #{my_ensemble_forward.1} parent=39 // pred_check
          %p261 = pneg %p132
        $region54: #{my_ensemble_forward.1} parent=39 // pred_check_branch
          %263 = sbr.rel (%p261) target = $region56
        $region55: #{my_ensemble_forward.1} parent=39 // pred_region
          %264 = dma.done [#allocation10], 16
        $region56: #{my_ensemble_forward.1} parent=39 // pred_fallthru
          _
        %s265 = smul.u32 4, %s22
        %p266 = scmp.lt.s32.totalorder %s265, 7
        %s267 = scalar_select %p266, %s265, 7
        %s268 = scalar_lea.vmem %s0, %s267
        %p269 = pneg %p43
        %p270 = pneg %p40
        %s271 = sand.u32 %s56, 1
        %s272 = scalar_lea.sflag [#allocation4], %s271
        %s273 = sand.u32 %s56, 1
        %s274 = smul.addr %s273, 2048
        %s275 = scalar_lea.vmem [#allocation3], %s274
        %p276 = pneg %p69
        %p277 = pneg %p66
        %p278 = pneg %p90
        %p279 = pneg %p87
        %p280 = pneg %p111
        %p281 = pneg %p108
        %p282 = pneg %p132
        %p283 = pneg %p129
        %p284 = pneg %p153
        %p285 = pneg %p150
        %s286 = smul.u32 4, %s22
        %p287 = scmp.lt.s32.totalorder %s286, 7
        %s288 = scalar_select %p287, %s286, 7
        %s289 = scalar_lea.vmem %s0, %s288
        %s290 = smul.u32 4, %s22
        %s291 = smul.u32 64, %s22
        %p292 = scmp.eq.s32.totalorder %s22, 0
        // Predicated region
        $region57: #{my_ensemble_forward.1} parent=39 // pred_check
          %p293 = pneg %p292
        $region58: #{my_ensemble_forward.1} parent=39 // pred_check_branch
          %295 = sbr.rel (%p293) target = $region60
        $region59: #{my_ensemble_forward.1} parent=39 // pred_region
          %296 = vst [vmem:[#allocation2] sm:$0xff] 0.0
          %297 = vst [vmem:[#allocation2 + $0x8] sm:$0xff] 0.0
        $region60: #{my_ensemble_forward.1} parent=39 // pred_fallthru
          _
        %v298 = vld [vmem:[#allocation2] sm:$0xff]
        %v299 = vld [vmem:[#allocation2 + $0x8] sm:$0xff]
        %v300 = vld [vmem:[%s289] sm:$0xf]
        %v301 = vld [vmem:[%s248] sm:$0xff]
        %v302 = vld [vmem:[%s248 + $0x8] sm:$0xff]
        %v303 = vld [vmem:[%s248 + $0x10] sm:$0xff]
        %v304 = vld [vmem:[%s248 + $0x18] sm:$0xff]
        %v305 = vld [vmem:[%s248 + $0x20] sm:$0xff]
        %v306 = vld [vmem:[%s248 + $0x28] sm:$0xff]
        %v307 = vld [vmem:[%s248 + $0x30] sm:$0xff]
        %v308 = vld [vmem:[%s248 + $0x38] sm:$0xff]
        %v309 = vld [vmem:[%s248 + $0x40] sm:$0xff]
        %v310 = vld [vmem:[%s248 + $0x48] sm:$0xff]
        %v311 = vld [vmem:[%s248 + $0x50] sm:$0xff]
        %v312 = vld [vmem:[%s248 + $0x58] sm:$0xff]
        %v313 = vld [vmem:[%s248 + $0x60] sm:$0xff]
        %v314 = vld [vmem:[%s248 + $0x68] sm:$0xff]
        %v315 = vld [vmem:[%s248 + $0x70] sm:$0xff]
        %v316 = vld [vmem:[%s248 + $0x78] sm:$0xff]
        %v317 = vld [vmem:[%s248 + $0x80] sm:$0xff]
        %v318 = vld [vmem:[%s248 + $0x88] sm:$0xff]
        %v319 = vld [vmem:[%s248 + $0x90] sm:$0xff]
        %v320 = vld [vmem:[%s248 + $0x98] sm:$0xff]
        %v321 = vld [vmem:[%s248 + $0xa0] sm:$0xff]
        %v322 = vld [vmem:[%s248 + $0xa8] sm:$0xff]
        %v323 = vld [vmem:[%s248 + $0xb0] sm:$0xff]
        %v324 = vld [vmem:[%s248 + $0xb8] sm:$0xff]
        %v325 = vld [vmem:[%s248 + $0xc0] sm:$0xff]
        %v326 = vld [vmem:[%s248 + $0xc8] sm:$0xff]
        %v327 = vld [vmem:[%s248 + $0xd0] sm:$0xff]
        %v328 = vld [vmem:[%s248 + $0xd8] sm:$0xff]
        %v329 = vld [vmem:[%s248 + $0xe0] sm:$0xff]
        %v330 = vld [vmem:[%s248 + $0xe8] sm:$0xff]
        %v331 = vld [vmem:[%s248 + $0xf0] sm:$0xff]
        %v332 = vld [vmem:[%s248 + $0xf8] sm:$0xff]
        %v333 = vld [vmem:[%s248 + $0x100] sm:$0xff]
        %v334 = vld [vmem:[%s248 + $0x108] sm:$0xff]
        %v335 = vld [vmem:[%s248 + $0x110] sm:$0xff]
        %v336 = vld [vmem:[%s248 + $0x118] sm:$0xff]
        %v337 = vld [vmem:[%s248 + $0x120] sm:$0xff]
        %v338 = vld [vmem:[%s248 + $0x128] sm:$0xff]
        %v339 = vld [vmem:[%s248 + $0x130] sm:$0xff]
        %v340 = vld [vmem:[%s248 + $0x138] sm:$0xff]
        %v341 = vld [vmem:[%s248 + $0x140] sm:$0xff]
        %v342 = vld [vmem:[%s248 + $0x148] sm:$0xff]
        %v343 = vld [vmem:[%s248 + $0x150] sm:$0xff]
        %v344 = vld [vmem:[%s248 + $0x158] sm:$0xff]
        %v345 = vld [vmem:[%s248 + $0x160] sm:$0xff]
        %v346 = vld [vmem:[%s248 + $0x168] sm:$0xff]
        %v347 = vld [vmem:[%s248 + $0x170] sm:$0xff]
        %v348 = vld [vmem:[%s248 + $0x178] sm:$0xff]
        %v349 = vld [vmem:[%s248 + $0x180] sm:$0xff]
        %v350 = vld [vmem:[%s248 + $0x188] sm:$0xff]
        %v351 = vld [vmem:[%s248 + $0x190] sm:$0xff]
        %v352 = vld [vmem:[%s248 + $0x198] sm:$0xff]
        %v353 = vld [vmem:[%s248 + $0x1a0] sm:$0xff]
        %v354 = vld [vmem:[%s248 + $0x1a8] sm:$0xff]
        %v355 = vld [vmem:[%s248 + $0x1b0] sm:$0xff]
        %v356 = vld [vmem:[%s248 + $0x1b8] sm:$0xff]
        %v357 = vld [vmem:[%s248 + $0x1c0] sm:$0xff]
        %v358 = vld [vmem:[%s248 + $0x1c8] sm:$0xff]
        %v359 = vld [vmem:[%s248 + $0x1d0] sm:$0xff]
        %v360 = vld [vmem:[%s248 + $0x1d8] sm:$0xff]
        %v361 = vld [vmem:[%s248 + $0x1e0] sm:$0xff]
        %v362 = vld [vmem:[%s248 + $0x1e8] sm:$0xff]
        %v363 = vld [vmem:[%s248 + $0x1f0] sm:$0xff]
        %v364 = vld [vmem:[%s248 + $0x1f8] sm:$0xff]
        %v365 = vld [vmem:[%s248 + $0x200] sm:$0xff]
        %v366 = vld [vmem:[%s248 + $0x208] sm:$0xff]
        %v367 = vld [vmem:[%s248 + $0x210] sm:$0xff]
        %v368 = vld [vmem:[%s248 + $0x218] sm:$0xff]
        %v369 = vld [vmem:[%s248 + $0x220] sm:$0xff]
        %v370 = vld [vmem:[%s248 + $0x228] sm:$0xff]
        %v371 = vld [vmem:[%s248 + $0x230] sm:$0xff]
        %v372 = vld [vmem:[%s248 + $0x238] sm:$0xff]
        %v373 = vld [vmem:[%s248 + $0x240] sm:$0xff]
        %v374 = vld [vmem:[%s248 + $0x248] sm:$0xff]
        %v375 = vld [vmem:[%s248 + $0x250] sm:$0xff]
        %v376 = vld [vmem:[%s248 + $0x258] sm:$0xff]
        %v377 = vld [vmem:[%s248 + $0x260] sm:$0xff]
        %v378 = vld [vmem:[%s248 + $0x268] sm:$0xff]
        %v379 = vld [vmem:[%s248 + $0x270] sm:$0xff]
        %v380 = vld [vmem:[%s248 + $0x278] sm:$0xff]
        %v381 = vld [vmem:[%s248 + $0x280] sm:$0xff]
        %v382 = vld [vmem:[%s248 + $0x288] sm:$0xff]
        %v383 = vld [vmem:[%s248 + $0x290] sm:$0xff]
        %v384 = vld [vmem:[%s248 + $0x298] sm:$0xff]
        %v385 = vld [vmem:[%s248 + $0x2a0] sm:$0xff]
        %v386 = vld [vmem:[%s248 + $0x2a8] sm:$0xff]
        %v387 = vld [vmem:[%s248 + $0x2b0] sm:$0xff]
        %v388 = vld [vmem:[%s248 + $0x2b8] sm:$0xff]
        %v389 = vld [vmem:[%s248 + $0x2c0] sm:$0xff]
        %v390 = vld [vmem:[%s248 + $0x2c8] sm:$0xff]
        %v391 = vld [vmem:[%s248 + $0x2d0] sm:$0xff]
        %v392 = vld [vmem:[%s248 + $0x2d8] sm:$0xff]
        %v393 = vld [vmem:[%s248 + $0x2e0] sm:$0xff]
        %v394 = vld [vmem:[%s248 + $0x2e8] sm:$0xff]
        %v395 = vld [vmem:[%s248 + $0x2f0] sm:$0xff]
        %v396 = vld [vmem:[%s248 + $0x2f8] sm:$0xff]
        %v397 = vld [vmem:[%s248 + $0x300] sm:$0xff]
        %v398 = vld [vmem:[%s248 + $0x308] sm:$0xff]
        %v399 = vld [vmem:[%s248 + $0x310] sm:$0xff]
        %v400 = vld [vmem:[%s248 + $0x318] sm:$0xff]
        %v401 = vld [vmem:[%s248 + $0x320] sm:$0xff]
        %v402 = vld [vmem:[%s248 + $0x328] sm:$0xff]
        %v403 = vld [vmem:[%s248 + $0x330] sm:$0xff]
        %v404 = vld [vmem:[%s248 + $0x338] sm:$0xff]
        %v405 = vld [vmem:[%s248 + $0x340] sm:$0xff]
        %v406 = vld [vmem:[%s248 + $0x348] sm:$0xff]
        %v407 = vld [vmem:[%s248 + $0x350] sm:$0xff]
        %v408 = vld [vmem:[%s248 + $0x358] sm:$0xff]
        %v409 = vld [vmem:[%s248 + $0x360] sm:$0xff]
        %v410 = vld [vmem:[%s248 + $0x368] sm:$0xff]
        %v411 = vld [vmem:[%s248 + $0x370] sm:$0xff]
        %v412 = vld [vmem:[%s248 + $0x378] sm:$0xff]
        %v413 = vld [vmem:[%s248 + $0x380] sm:$0xff]
        %v414 = vld [vmem:[%s248 + $0x388] sm:$0xff]
        %v415 = vld [vmem:[%s248 + $0x390] sm:$0xff]
        %v416 = vld [vmem:[%s248 + $0x398] sm:$0xff]
        %v417 = vld [vmem:[%s248 + $0x3a0] sm:$0xff]
        %v418 = vld [vmem:[%s248 + $0x3a8] sm:$0xff]
        %v419 = vld [vmem:[%s248 + $0x3b0] sm:$0xff]
        %v420 = vld [vmem:[%s248 + $0x3b8] sm:$0xff]
        %v421 = vld [vmem:[%s248 + $0x3c0] sm:$0xff]
        %v422 = vld [vmem:[%s248 + $0x3c8] sm:$0xff]
        %v423 = vld [vmem:[%s248 + $0x3d0] sm:$0xff]
        %v424 = vld [vmem:[%s248 + $0x3d8] sm:$0xff]
        %v425 = vld [vmem:[%s248 + $0x3e0] sm:$0xff]
        %v426 = vld [vmem:[%s248 + $0x3e8] sm:$0xff]
        %v427 = vld [vmem:[%s248 + $0x3f0] sm:$0xff]
        %v428 = vld [vmem:[%s248 + $0x3f8] sm:$0xff]
        %v429 = vld [vmem:[%s248 + $0x400] sm:$0xff]
        %v430 = vld [vmem:[%s248 + $0x408] sm:$0xff]
        %v431 = vld [vmem:[%s248 + $0x410] sm:$0xff]
        %v432 = vld [vmem:[%s248 + $0x418] sm:$0xff]
        %v433 = vld [vmem:[%s248 + $0x420] sm:$0xff]
        %v434 = vld [vmem:[%s248 + $0x428] sm:$0xff]
        %v435 = vld [vmem:[%s248 + $0x430] sm:$0xff]
        %v436 = vld [vmem:[%s248 + $0x438] sm:$0xff]
        %v437 = vld [vmem:[%s248 + $0x440] sm:$0xff]
        %v438 = vld [vmem:[%s248 + $0x448] sm:$0xff]
        %v439 = vld [vmem:[%s248 + $0x450] sm:$0xff]
        %v440 = vld [vmem:[%s248 + $0x458] sm:$0xff]
        %v441 = vld [vmem:[%s248 + $0x460] sm:$0xff]
        %v442 = vld [vmem:[%s248 + $0x468] sm:$0xff]
        %v443 = vld [vmem:[%s248 + $0x470] sm:$0xff]
        %v444 = vld [vmem:[%s248 + $0x478] sm:$0xff]
        %v445 = vld [vmem:[%s248 + $0x480] sm:$0xff]
        %v446 = vld [vmem:[%s248 + $0x488] sm:$0xff]
        %v447 = vld [vmem:[%s248 + $0x490] sm:$0xff]
        %v448 = vld [vmem:[%s248 + $0x498] sm:$0xff]
        %v449 = vld [vmem:[%s248 + $0x4a0] sm:$0xff]
        %v450 = vld [vmem:[%s248 + $0x4a8] sm:$0xff]
        %v451 = vld [vmem:[%s248 + $0x4b0] sm:$0xff]
        %v452 = vld [vmem:[%s248 + $0x4b8] sm:$0xff]
        %v453 = vld [vmem:[%s248 + $0x4c0] sm:$0xff]
        %v454 = vld [vmem:[%s248 + $0x4c8] sm:$0xff]
        %v455 = vld [vmem:[%s248 + $0x4d0] sm:$0xff]
        %v456 = vld [vmem:[%s248 + $0x4d8] sm:$0xff]
        %v457 = vld [vmem:[%s248 + $0x4e0] sm:$0xff]
        %v458 = vld [vmem:[%s248 + $0x4e8] sm:$0xff]
        %v459 = vld [vmem:[%s248 + $0x4f0] sm:$0xff]
        %v460 = vld [vmem:[%s248 + $0x4f8] sm:$0xff]
        %v461 = vld [vmem:[%s248 + $0x500] sm:$0xff]
        %v462 = vld [vmem:[%s248 + $0x508] sm:$0xff]
        %v463 = vld [vmem:[%s248 + $0x510] sm:$0xff]
        %v464 = vld [vmem:[%s248 + $0x518] sm:$0xff]
        %v465 = vld [vmem:[%s248 + $0x520] sm:$0xff]
        %v466 = vld [vmem:[%s248 + $0x528] sm:$0xff]
        %v467 = vld [vmem:[%s248 + $0x530] sm:$0xff]
        %v468 = vld [vmem:[%s248 + $0x538] sm:$0xff]
        %v469 = vld [vmem:[%s248 + $0x540] sm:$0xff]
        %v470 = vld [vmem:[%s248 + $0x548] sm:$0xff]
        %v471 = vld [vmem:[%s248 + $0x550] sm:$0xff]
        %v472 = vld [vmem:[%s248 + $0x558] sm:$0xff]
        %v473 = vld [vmem:[%s248 + $0x560] sm:$0xff]
        %v474 = vld [vmem:[%s248 + $0x568] sm:$0xff]
        %v475 = vld [vmem:[%s248 + $0x570] sm:$0xff]
        %v476 = vld [vmem:[%s248 + $0x578] sm:$0xff]
        %v477 = vld [vmem:[%s248 + $0x580] sm:$0xff]
        %v478 = vld [vmem:[%s248 + $0x588] sm:$0xff]
        %v479 = vld [vmem:[%s248 + $0x590] sm:$0xff]
        %v480 = vld [vmem:[%s248 + $0x598] sm:$0xff]
        %v481 = vld [vmem:[%s248 + $0x5a0] sm:$0xff]
        %v482 = vld [vmem:[%s248 + $0x5a8] sm:$0xff]
        %v483 = vld [vmem:[%s248 + $0x5b0] sm:$0xff]
        %v484 = vld [vmem:[%s248 + $0x5b8] sm:$0xff]
        %v485 = vld [vmem:[%s248 + $0x5c0] sm:$0xff]
        %v486 = vld [vmem:[%s248 + $0x5c8] sm:$0xff]
        %v487 = vld [vmem:[%s248 + $0x5d0] sm:$0xff]
        %v488 = vld [vmem:[%s248 + $0x5d8] sm:$0xff]
        %v489 = vld [vmem:[%s248 + $0x5e0] sm:$0xff]
        %v490 = vld [vmem:[%s248 + $0x5e8] sm:$0xff]
        %v491 = vld [vmem:[%s248 + $0x5f0] sm:$0xff]
        %v492 = vld [vmem:[%s248 + $0x5f8] sm:$0xff]
        %v493 = vld [vmem:[%s248 + $0x600] sm:$0xff]
        %v494 = vld [vmem:[%s248 + $0x608] sm:$0xff]
        %v495 = vld [vmem:[%s248 + $0x610] sm:$0xff]
        %v496 = vld [vmem:[%s248 + $0x618] sm:$0xff]
        %v497 = vld [vmem:[%s248 + $0x620] sm:$0xff]
        %v498 = vld [vmem:[%s248 + $0x628] sm:$0xff]
        %v499 = vld [vmem:[%s248 + $0x630] sm:$0xff]
        %v500 = vld [vmem:[%s248 + $0x638] sm:$0xff]
        %v501 = vld [vmem:[%s248 + $0x640] sm:$0xff]
        %v502 = vld [vmem:[%s248 + $0x648] sm:$0xff]
        %v503 = vld [vmem:[%s248 + $0x650] sm:$0xff]
        %v504 = vld [vmem:[%s248 + $0x658] sm:$0xff]
        %v505 = vld [vmem:[%s248 + $0x660] sm:$0xff]
        %v506 = vld [vmem:[%s248 + $0x668] sm:$0xff]
        %v507 = vld [vmem:[%s248 + $0x670] sm:$0xff]
        %v508 = vld [vmem:[%s248 + $0x678] sm:$0xff]
        %v509 = vld [vmem:[%s248 + $0x680] sm:$0xff]
        %v510 = vld [vmem:[%s248 + $0x688] sm:$0xff]
        %v511 = vld [vmem:[%s248 + $0x690] sm:$0xff]
        %v512 = vld [vmem:[%s248 + $0x698] sm:$0xff]
        %v513 = vld [vmem:[%s248 + $0x6a0] sm:$0xff]
        %v514 = vld [vmem:[%s248 + $0x6a8] sm:$0xff]
        %v515 = vld [vmem:[%s248 + $0x6b0] sm:$0xff]
        %v516 = vld [vmem:[%s248 + $0x6b8] sm:$0xff]
        %v517 = vld [vmem:[%s248 + $0x6c0] sm:$0xff]
        %v518 = vld [vmem:[%s248 + $0x6c8] sm:$0xff]
        %v519 = vld [vmem:[%s248 + $0x6d0] sm:$0xff]
        %v520 = vld [vmem:[%s248 + $0x6d8] sm:$0xff]
        %v521 = vld [vmem:[%s248 + $0x6e0] sm:$0xff]
        %v522 = vld [vmem:[%s248 + $0x6e8] sm:$0xff]
        %v523 = vld [vmem:[%s248 + $0x6f0] sm:$0xff]
        %v524 = vld [vmem:[%s248 + $0x6f8] sm:$0xff]
        %v525 = vld [vmem:[%s248 + $0x700] sm:$0xff]
        %v526 = vld [vmem:[%s248 + $0x708] sm:$0xff]
        %v527 = vld [vmem:[%s248 + $0x710] sm:$0xff]
        %v528 = vld [vmem:[%s248 + $0x718] sm:$0xff]
        %v529 = vld [vmem:[%s248 + $0x720] sm:$0xff]
        %v530 = vld [vmem:[%s248 + $0x728] sm:$0xff]
        %v531 = vld [vmem:[%s248 + $0x730] sm:$0xff]
        %v532 = vld [vmem:[%s248 + $0x738] sm:$0xff]
        %v533 = vld [vmem:[%s248 + $0x740] sm:$0xff]
        %v534 = vld [vmem:[%s248 + $0x748] sm:$0xff]
        %v535 = vld [vmem:[%s248 + $0x750] sm:$0xff]
        %v536 = vld [vmem:[%s248 + $0x758] sm:$0xff]
        %v537 = vld [vmem:[%s248 + $0x760] sm:$0xff]
        %v538 = vld [vmem:[%s248 + $0x768] sm:$0xff]
        %v539 = vld [vmem:[%s248 + $0x770] sm:$0xff]
        %v540 = vld [vmem:[%s248 + $0x778] sm:$0xff]
        %v541 = vld [vmem:[%s248 + $0x780] sm:$0xff]
        %v542 = vld [vmem:[%s248 + $0x788] sm:$0xff]
        %v543 = vld [vmem:[%s248 + $0x790] sm:$0xff]
        %v544 = vld [vmem:[%s248 + $0x798] sm:$0xff]
        %v545 = vld [vmem:[%s248 + $0x7a0] sm:$0xff]
        %v546 = vld [vmem:[%s248 + $0x7a8] sm:$0xff]
        %v547 = vld [vmem:[%s248 + $0x7b0] sm:$0xff]
        %v548 = vld [vmem:[%s248 + $0x7b8] sm:$0xff]
        %v549 = vld [vmem:[%s248 + $0x7c0] sm:$0xff]
        %v550 = vld [vmem:[%s248 + $0x7c8] sm:$0xff]
        %v551 = vld [vmem:[%s248 + $0x7d0] sm:$0xff]
        %v552 = vld [vmem:[%s248 + $0x7d8] sm:$0xff]
        %v553 = vld [vmem:[%s248 + $0x7e0] sm:$0xff]
        %v554 = vld [vmem:[%s248 + $0x7e8] sm:$0xff]
        %v555 = vld [vmem:[%s248 + $0x7f0] sm:$0xff]
        %v556 = vld [vmem:[%s248 + $0x7f8] sm:$0xff]
        %v559 = vunpack.c.l.s4 1966171168
        %v560 = vunpack.c.0.s8 %v559
        %v561 = vlaneseq
        %v562 = vshrl.u32 %v561, 7
        %v563 = vsub.s32 %v560, %v562
        %v564 = vrot.slane %v300, %v563
        %v565 = vcombine.high %v564, %v564
        %v567 = vunpack.c.l.s4 1966171168
        %v568 = vunpack.c.0.s8 %v567
        %v569 = vlaneseq
        %v570 = vshrl.u32 %v569, 7
        %v571 = vsub.s32 %v568, %v570
        %v572 = vrot.slane %v564, %v571
        %v574 = vunpack.c.l.s4 1966171168
        %v575 = vunpack.c.0.s8 %v574
        %v576 = vlaneseq
        %v577 = vshrl.u32 %v576, 7
        %v578 = vsub.s32 %v575, %v577
        %v579 = vrot.slane %v565, %v578
        %v580 = vcombine.high %v572, %v572
        %v581 = vcombine.high %v579, %v579
        %v842 = vunpack.c.l.b16 %v301
        %v843 = vunpack.c.h.b16 %v301
        %v844 = vunpack.c.l.b16 %v302
        %v845 = vunpack.c.h.b16 %v302
        %v846 = vunpack.c.l.b16 %v303
        %v847 = vunpack.c.h.b16 %v303
        %v848 = vunpack.c.l.b16 %v304
        %v849 = vunpack.c.h.b16 %v304
        %v850 = vunpack.c.l.b16 %v305
        %v851 = vunpack.c.h.b16 %v305
        %v852 = vunpack.c.l.b16 %v306
        %v853 = vunpack.c.h.b16 %v306
        %v854 = vunpack.c.l.b16 %v307
        %v855 = vunpack.c.h.b16 %v307
        %v856 = vunpack.c.l.b16 %v308
        %v857 = vunpack.c.h.b16 %v308
        %v858 = vunpack.c.l.b16 %v309
        %v859 = vunpack.c.h.b16 %v309
        %v860 = vunpack.c.l.b16 %v310
        %v861 = vunpack.c.h.b16 %v310
        %v862 = vunpack.c.l.b16 %v311
        %v863 = vunpack.c.h.b16 %v311
        %v864 = vunpack.c.l.b16 %v312
        %v865 = vunpack.c.h.b16 %v312
        %v866 = vunpack.c.l.b16 %v313
        %v867 = vunpack.c.h.b16 %v313
        %v868 = vunpack.c.l.b16 %v314
        %v869 = vunpack.c.h.b16 %v314
        %v870 = vunpack.c.l.b16 %v315
        %v871 = vunpack.c.h.b16 %v315
        %v872 = vunpack.c.l.b16 %v316
        %v873 = vunpack.c.h.b16 %v316
        %v874 = vunpack.c.l.b16 %v317
        %v875 = vunpack.c.h.b16 %v317
        %v876 = vunpack.c.l.b16 %v318
        %v877 = vunpack.c.h.b16 %v318
        %v878 = vunpack.c.l.b16 %v319
        %v879 = vunpack.c.h.b16 %v319
        %v880 = vunpack.c.l.b16 %v320
        %v881 = vunpack.c.h.b16 %v320
        %v882 = vunpack.c.l.b16 %v321
        %v883 = vunpack.c.h.b16 %v321
        %v884 = vunpack.c.l.b16 %v322
        %v885 = vunpack.c.h.b16 %v322
        %v886 = vunpack.c.l.b16 %v323
        %v887 = vunpack.c.h.b16 %v323
        %v888 = vunpack.c.l.b16 %v324
        %v889 = vunpack.c.h.b16 %v324
        %v890 = vunpack.c.l.b16 %v325
        %v891 = vunpack.c.h.b16 %v325
        %v892 = vunpack.c.l.b16 %v326
        %v893 = vunpack.c.h.b16 %v326
        %v894 = vunpack.c.l.b16 %v327
        %v895 = vunpack.c.h.b16 %v327
        %v896 = vunpack.c.l.b16 %v328
        %v897 = vunpack.c.h.b16 %v328
        %v898 = vunpack.c.l.b16 %v329
        %v899 = vunpack.c.h.b16 %v329
        %v900 = vunpack.c.l.b16 %v330
        %v901 = vunpack.c.h.b16 %v330
        %v902 = vunpack.c.l.b16 %v331
        %v903 = vunpack.c.h.b16 %v331
        %v904 = vunpack.c.l.b16 %v332
        %v905 = vunpack.c.h.b16 %v332
        %v906 = vunpack.c.l.b16 %v333
        %v907 = vunpack.c.h.b16 %v333
        %v908 = vunpack.c.l.b16 %v334
        %v909 = vunpack.c.h.b16 %v334
        %v910 = vunpack.c.l.b16 %v335
        %v911 = vunpack.c.h.b16 %v335
        %v912 = vunpack.c.l.b16 %v336
        %v913 = vunpack.c.h.b16 %v336
        %v914 = vunpack.c.l.b16 %v337
        %v915 = vunpack.c.h.b16 %v337
        %v916 = vunpack.c.l.b16 %v338
        %v917 = vunpack.c.h.b16 %v338
        %v918 = vunpack.c.l.b16 %v339
        %v919 = vunpack.c.h.b16 %v339
        %v920 = vunpack.c.l.b16 %v340
        %v921 = vunpack.c.h.b16 %v340
        %v922 = vunpack.c.l.b16 %v341
        %v923 = vunpack.c.h.b16 %v341
        %v924 = vunpack.c.l.b16 %v342
        %v925 = vunpack.c.h.b16 %v342
        %v926 = vunpack.c.l.b16 %v343
        %v927 = vunpack.c.h.b16 %v343
        %v928 = vunpack.c.l.b16 %v344
        %v929 = vunpack.c.h.b16 %v344
        %v930 = vunpack.c.l.b16 %v345
        %v931 = vunpack.c.h.b16 %v345
        %v932 = vunpack.c.l.b16 %v346
        %v933 = vunpack.c.h.b16 %v346
        %v934 = vunpack.c.l.b16 %v347
        %v935 = vunpack.c.h.b16 %v347
        %v936 = vunpack.c.l.b16 %v348
        %v937 = vunpack.c.h.b16 %v348
        %v938 = vunpack.c.l.b16 %v349
        %v939 = vunpack.c.h.b16 %v349
        %v940 = vunpack.c.l.b16 %v350
        %v941 = vunpack.c.h.b16 %v350
        %v942 = vunpack.c.l.b16 %v351
        %v943 = vunpack.c.h.b16 %v351
        %v944 = vunpack.c.l.b16 %v352
        %v945 = vunpack.c.h.b16 %v352
        %v946 = vunpack.c.l.b16 %v353
        %v947 = vunpack.c.h.b16 %v353
        %v948 = vunpack.c.l.b16 %v354
        %v949 = vunpack.c.h.b16 %v354
        %v950 = vunpack.c.l.b16 %v355
        %v951 = vunpack.c.h.b16 %v355
        %v952 = vunpack.c.l.b16 %v356
        %v953 = vunpack.c.h.b16 %v356
        %v954 = vunpack.c.l.b16 %v357
        %v955 = vunpack.c.h.b16 %v357
        %v956 = vunpack.c.l.b16 %v358
        %v957 = vunpack.c.h.b16 %v358
        %v958 = vunpack.c.l.b16 %v359
        %v959 = vunpack.c.h.b16 %v359
        %v960 = vunpack.c.l.b16 %v360
        %v961 = vunpack.c.h.b16 %v360
        %v962 = vunpack.c.l.b16 %v361
        %v963 = vunpack.c.h.b16 %v361
        %v964 = vunpack.c.l.b16 %v362
        %v965 = vunpack.c.h.b16 %v362
        %v966 = vunpack.c.l.b16 %v363
        %v967 = vunpack.c.h.b16 %v363
        %v968 = vunpack.c.l.b16 %v364
        %v969 = vunpack.c.h.b16 %v364
        %v970 = vunpack.c.l.b16 %v365
        %v971 = vunpack.c.h.b16 %v365
        %v972 = vunpack.c.l.b16 %v366
        %v973 = vunpack.c.h.b16 %v366
        %v974 = vunpack.c.l.b16 %v367
        %v975 = vunpack.c.h.b16 %v367
        %v976 = vunpack.c.l.b16 %v368
        %v977 = vunpack.c.h.b16 %v368
        %v978 = vunpack.c.l.b16 %v369
        %v979 = vunpack.c.h.b16 %v369
        %v980 = vunpack.c.l.b16 %v370
        %v981 = vunpack.c.h.b16 %v370
        %v982 = vunpack.c.l.b16 %v371
        %v983 = vunpack.c.h.b16 %v371
        %v984 = vunpack.c.l.b16 %v372
        %v985 = vunpack.c.h.b16 %v372
        %v986 = vunpack.c.l.b16 %v373
        %v987 = vunpack.c.h.b16 %v373
        %v988 = vunpack.c.l.b16 %v374
        %v989 = vunpack.c.h.b16 %v374
        %v990 = vunpack.c.l.b16 %v375
        %v991 = vunpack.c.h.b16 %v375
        %v992 = vunpack.c.l.b16 %v376
        %v993 = vunpack.c.h.b16 %v376
        %v994 = vunpack.c.l.b16 %v377
        %v995 = vunpack.c.h.b16 %v377
        %v996 = vunpack.c.l.b16 %v378
        %v997 = vunpack.c.h.b16 %v378
        %v998 = vunpack.c.l.b16 %v379
        %v999 = vunpack.c.h.b16 %v379
        %v1000 = vunpack.c.l.b16 %v380
        %v1001 = vunpack.c.h.b16 %v380
        %v1002 = vunpack.c.l.b16 %v381
        %v1003 = vunpack.c.h.b16 %v381
        %v1004 = vunpack.c.l.b16 %v382
        %v1005 = vunpack.c.h.b16 %v382
        %v1006 = vunpack.c.l.b16 %v383
        %v1007 = vunpack.c.h.b16 %v383
        %v1008 = vunpack.c.l.b16 %v384
        %v1009 = vunpack.c.h.b16 %v384
        %v1010 = vunpack.c.l.b16 %v385
        %v1011 = vunpack.c.h.b16 %v385
        %v1012 = vunpack.c.l.b16 %v386
        %v1013 = vunpack.c.h.b16 %v386
        %v1014 = vunpack.c.l.b16 %v387
        %v1015 = vunpack.c.h.b16 %v387
        %v1016 = vunpack.c.l.b16 %v388
        %v1017 = vunpack.c.h.b16 %v388
        %v1018 = vunpack.c.l.b16 %v389
        %v1019 = vunpack.c.h.b16 %v389
        %v1020 = vunpack.c.l.b16 %v390
        %v1021 = vunpack.c.h.b16 %v390
        %v1022 = vunpack.c.l.b16 %v391
        %v1023 = vunpack.c.h.b16 %v391
        %v1024 = vunpack.c.l.b16 %v392
        %v1025 = vunpack.c.h.b16 %v392
        %v1026 = vunpack.c.l.b16 %v393
        %v1027 = vunpack.c.h.b16 %v393
        %v1028 = vunpack.c.l.b16 %v394
        %v1029 = vunpack.c.h.b16 %v394
        %v1030 = vunpack.c.l.b16 %v395
        %v1031 = vunpack.c.h.b16 %v395
        %v1032 = vunpack.c.l.b16 %v396
        %v1033 = vunpack.c.h.b16 %v396
        %v1034 = vunpack.c.l.b16 %v397
        %v1035 = vunpack.c.h.b16 %v397
        %v1036 = vunpack.c.l.b16 %v398
        %v1037 = vunpack.c.h.b16 %v398
        %v1038 = vunpack.c.l.b16 %v399
        %v1039 = vunpack.c.h.b16 %v399
        %v1040 = vunpack.c.l.b16 %v400
        %v1041 = vunpack.c.h.b16 %v400
        %v1042 = vunpack.c.l.b16 %v401
        %v1043 = vunpack.c.h.b16 %v401
        %v1044 = vunpack.c.l.b16 %v402
        %v1045 = vunpack.c.h.b16 %v402
        %v1046 = vunpack.c.l.b16 %v403
        %v1047 = vunpack.c.h.b16 %v403
        %v1048 = vunpack.c.l.b16 %v404
        %v1049 = vunpack.c.h.b16 %v404
        %v1050 = vunpack.c.l.b16 %v405
        %v1051 = vunpack.c.h.b16 %v405
        %v1052 = vunpack.c.l.b16 %v406
        %v1053 = vunpack.c.h.b16 %v406
        %v1054 = vunpack.c.l.b16 %v407
        %v1055 = vunpack.c.h.b16 %v407
        %v1056 = vunpack.c.l.b16 %v408
        %v1057 = vunpack.c.h.b16 %v408
        %v1058 = vunpack.c.l.b16 %v409
        %v1059 = vunpack.c.h.b16 %v409
        %v1060 = vunpack.c.l.b16 %v410
        %v1061 = vunpack.c.h.b16 %v410
        %v1062 = vunpack.c.l.b16 %v411
        %v1063 = vunpack.c.h.b16 %v411
        %v1064 = vunpack.c.l.b16 %v412
        %v1065 = vunpack.c.h.b16 %v412
        %v1066 = vunpack.c.l.b16 %v413
        %v1067 = vunpack.c.h.b16 %v413
        %v1068 = vunpack.c.l.b16 %v414
        %v1069 = vunpack.c.h.b16 %v414
        %v1070 = vunpack.c.l.b16 %v415
        %v1071 = vunpack.c.h.b16 %v415
        %v1072 = vunpack.c.l.b16 %v416
        %v1073 = vunpack.c.h.b16 %v416
        %v1074 = vunpack.c.l.b16 %v417
        %v1075 = vunpack.c.h.b16 %v417
        %v1076 = vunpack.c.l.b16 %v418
        %v1077 = vunpack.c.h.b16 %v418
        %v1078 = vunpack.c.l.b16 %v419
        %v1079 = vunpack.c.h.b16 %v419
        %v1080 = vunpack.c.l.b16 %v420
        %v1081 = vunpack.c.h.b16 %v420
        %v1082 = vunpack.c.l.b16 %v421
        %v1083 = vunpack.c.h.b16 %v421
        %v1084 = vunpack.c.l.b16 %v422
        %v1085 = vunpack.c.h.b16 %v422
        %v1086 = vunpack.c.l.b16 %v423
        %v1087 = vunpack.c.h.b16 %v423
        %v1088 = vunpack.c.l.b16 %v424
        %v1089 = vunpack.c.h.b16 %v424
        %v1090 = vunpack.c.l.b16 %v425
        %v1091 = vunpack.c.h.b16 %v425
        %v1092 = vunpack.c.l.b16 %v426
        %v1093 = vunpack.c.h.b16 %v426
        %v1094 = vunpack.c.l.b16 %v427
        %v1095 = vunpack.c.h.b16 %v427
        %v1096 = vunpack.c.l.b16 %v428
        %v1097 = vunpack.c.h.b16 %v428
        %v1098 = vunpack.c.l.b16 %v429
        %v1099 = vunpack.c.h.b16 %v429
        %v1100 = vunpack.c.l.b16 %v430
        %v1101 = vunpack.c.h.b16 %v430
        %v1102 = vunpack.c.l.b16 %v431
        %v1103 = vunpack.c.h.b16 %v431
        %v1104 = vunpack.c.l.b16 %v432
        %v1105 = vunpack.c.h.b16 %v432
        %v1106 = vunpack.c.l.b16 %v433
        %v1107 = vunpack.c.h.b16 %v433
        %v1108 = vunpack.c.l.b16 %v434
        %v1109 = vunpack.c.h.b16 %v434
        %v1110 = vunpack.c.l.b16 %v435
        %v1111 = vunpack.c.h.b16 %v435
        %v1112 = vunpack.c.l.b16 %v436
        %v1113 = vunpack.c.h.b16 %v436
        %v1114 = vunpack.c.l.b16 %v437
        %v1115 = vunpack.c.h.b16 %v437
        %v1116 = vunpack.c.l.b16 %v438
        %v1117 = vunpack.c.h.b16 %v438
        %v1118 = vunpack.c.l.b16 %v439
        %v1119 = vunpack.c.h.b16 %v439
        %v1120 = vunpack.c.l.b16 %v440
        %v1121 = vunpack.c.h.b16 %v440
        %v1122 = vunpack.c.l.b16 %v441
        %v1123 = vunpack.c.h.b16 %v441
        %v1124 = vunpack.c.l.b16 %v442
        %v1125 = vunpack.c.h.b16 %v442
        %v1126 = vunpack.c.l.b16 %v443
        %v1127 = vunpack.c.h.b16 %v443
        %v1128 = vunpack.c.l.b16 %v444
        %v1129 = vunpack.c.h.b16 %v444
        %v1130 = vunpack.c.l.b16 %v445
        %v1131 = vunpack.c.h.b16 %v445
        %v1132 = vunpack.c.l.b16 %v446
        %v1133 = vunpack.c.h.b16 %v446
        %v1134 = vunpack.c.l.b16 %v447
        %v1135 = vunpack.c.h.b16 %v447
        %v1136 = vunpack.c.l.b16 %v448
        %v1137 = vunpack.c.h.b16 %v448
        %v1138 = vunpack.c.l.b16 %v449
        %v1139 = vunpack.c.h.b16 %v449
        %v1140 = vunpack.c.l.b16 %v450
        %v1141 = vunpack.c.h.b16 %v450
        %v1142 = vunpack.c.l.b16 %v451
        %v1143 = vunpack.c.h.b16 %v451
        %v1144 = vunpack.c.l.b16 %v452
        %v1145 = vunpack.c.h.b16 %v452
        %v1146 = vunpack.c.l.b16 %v453
        %v1147 = vunpack.c.h.b16 %v453
        %v1148 = vunpack.c.l.b16 %v454
        %v1149 = vunpack.c.h.b16 %v454
        %v1150 = vunpack.c.l.b16 %v455
        %v1151 = vunpack.c.h.b16 %v455
        %v1152 = vunpack.c.l.b16 %v456
        %v1153 = vunpack.c.h.b16 %v456
        %v1154 = vunpack.c.l.b16 %v457
        %v1155 = vunpack.c.h.b16 %v457
        %v1156 = vunpack.c.l.b16 %v458
        %v1157 = vunpack.c.h.b16 %v458
        %v1158 = vunpack.c.l.b16 %v459
        %v1159 = vunpack.c.h.b16 %v459
        %v1160 = vunpack.c.l.b16 %v460
        %v1161 = vunpack.c.h.b16 %v460
        %v1162 = vunpack.c.l.b16 %v461
        %v1163 = vunpack.c.h.b16 %v461
        %v1164 = vunpack.c.l.b16 %v462
        %v1165 = vunpack.c.h.b16 %v462
        %v1166 = vunpack.c.l.b16 %v463
        %v1167 = vunpack.c.h.b16 %v463
        %v1168 = vunpack.c.l.b16 %v464
        %v1169 = vunpack.c.h.b16 %v464
        %v1170 = vunpack.c.l.b16 %v465
        %v1171 = vunpack.c.h.b16 %v465
        %v1172 = vunpack.c.l.b16 %v466
        %v1173 = vunpack.c.h.b16 %v466
        %v1174 = vunpack.c.l.b16 %v467
        %v1175 = vunpack.c.h.b16 %v467
        %v1176 = vunpack.c.l.b16 %v468
        %v1177 = vunpack.c.h.b16 %v468
        %v1178 = vunpack.c.l.b16 %v469
        %v1179 = vunpack.c.h.b16 %v469
        %v1180 = vunpack.c.l.b16 %v470
        %v1181 = vunpack.c.h.b16 %v470
        %v1182 = vunpack.c.l.b16 %v471
        %v1183 = vunpack.c.h.b16 %v471
        %v1184 = vunpack.c.l.b16 %v472
        %v1185 = vunpack.c.h.b16 %v472
        %v1186 = vunpack.c.l.b16 %v473
        %v1187 = vunpack.c.h.b16 %v473
        %v1188 = vunpack.c.l.b16 %v474
        %v1189 = vunpack.c.h.b16 %v474
        %v1190 = vunpack.c.l.b16 %v475
        %v1191 = vunpack.c.h.b16 %v475
        %v1192 = vunpack.c.l.b16 %v476
        %v1193 = vunpack.c.h.b16 %v476
        %v1194 = vunpack.c.l.b16 %v477
        %v1195 = vunpack.c.h.b16 %v477
        %v1196 = vunpack.c.l.b16 %v478
        %v1197 = vunpack.c.h.b16 %v478
        %v1198 = vunpack.c.l.b16 %v479
        %v1199 = vunpack.c.h.b16 %v479
        %v1200 = vunpack.c.l.b16 %v480
        %v1201 = vunpack.c.h.b16 %v480
        %v1202 = vunpack.c.l.b16 %v481
        %v1203 = vunpack.c.h.b16 %v481
        %v1204 = vunpack.c.l.b16 %v482
        %v1205 = vunpack.c.h.b16 %v482
        %v1206 = vunpack.c.l.b16 %v483
        %v1207 = vunpack.c.h.b16 %v483
        %v1208 = vunpack.c.l.b16 %v484
        %v1209 = vunpack.c.h.b16 %v484
        %v1210 = vunpack.c.l.b16 %v485
        %v1211 = vunpack.c.h.b16 %v485
        %v1212 = vunpack.c.l.b16 %v486
        %v1213 = vunpack.c.h.b16 %v486
        %v1214 = vunpack.c.l.b16 %v487
        %v1215 = vunpack.c.h.b16 %v487
        %v1216 = vunpack.c.l.b16 %v488
        %v1217 = vunpack.c.h.b16 %v488
        %v1218 = vunpack.c.l.b16 %v489
        %v1219 = vunpack.c.h.b16 %v489
        %v1220 = vunpack.c.l.b16 %v490
        %v1221 = vunpack.c.h.b16 %v490
        %v1222 = vunpack.c.l.b16 %v491
        %v1223 = vunpack.c.h.b16 %v491
        %v1224 = vunpack.c.l.b16 %v492
        %v1225 = vunpack.c.h.b16 %v492
        %v1226 = vunpack.c.l.b16 %v493
        %v1227 = vunpack.c.h.b16 %v493
        %v1228 = vunpack.c.l.b16 %v494
        %v1229 = vunpack.c.h.b16 %v494
        %v1230 = vunpack.c.l.b16 %v495
        %v1231 = vunpack.c.h.b16 %v495
        %v1232 = vunpack.c.l.b16 %v496
        %v1233 = vunpack.c.h.b16 %v496
        %v1234 = vunpack.c.l.b16 %v497
        %v1235 = vunpack.c.h.b16 %v497
        %v1236 = vunpack.c.l.b16 %v498
        %v1237 = vunpack.c.h.b16 %v498
        %v1238 = vunpack.c.l.b16 %v499
        %v1239 = vunpack.c.h.b16 %v499
        %v1240 = vunpack.c.l.b16 %v500
        %v1241 = vunpack.c.h.b16 %v500
        %v1242 = vunpack.c.l.b16 %v501
        %v1243 = vunpack.c.h.b16 %v501
        %v1244 = vunpack.c.l.b16 %v502
        %v1245 = vunpack.c.h.b16 %v502
        %v1246 = vunpack.c.l.b16 %v503
        %v1247 = vunpack.c.h.b16 %v503
        %v1248 = vunpack.c.l.b16 %v504
        %v1249 = vunpack.c.h.b16 %v504
        %v1250 = vunpack.c.l.b16 %v505
        %v1251 = vunpack.c.h.b16 %v505
        %v1252 = vunpack.c.l.b16 %v506
        %v1253 = vunpack.c.h.b16 %v506
        %v1254 = vunpack.c.l.b16 %v507
        %v1255 = vunpack.c.h.b16 %v507
        %v1256 = vunpack.c.l.b16 %v508
        %v1257 = vunpack.c.h.b16 %v508
        %v1258 = vunpack.c.l.b16 %v509
        %v1259 = vunpack.c.h.b16 %v509
        %v1260 = vunpack.c.l.b16 %v510
        %v1261 = vunpack.c.h.b16 %v510
        %v1262 = vunpack.c.l.b16 %v511
        %v1263 = vunpack.c.h.b16 %v511
        %v1264 = vunpack.c.l.b16 %v512
        %v1265 = vunpack.c.h.b16 %v512
        %v1266 = vunpack.c.l.b16 %v513
        %v1267 = vunpack.c.h.b16 %v513
        %v1268 = vunpack.c.l.b16 %v514
        %v1269 = vunpack.c.h.b16 %v514
        %v1270 = vunpack.c.l.b16 %v515
        %v1271 = vunpack.c.h.b16 %v515
        %v1272 = vunpack.c.l.b16 %v516
        %v1273 = vunpack.c.h.b16 %v516
        %v1274 = vunpack.c.l.b16 %v517
        %v1275 = vunpack.c.h.b16 %v517
        %v1276 = vunpack.c.l.b16 %v518
        %v1277 = vunpack.c.h.b16 %v518
        %v1278 = vunpack.c.l.b16 %v519
        %v1279 = vunpack.c.h.b16 %v519
        %v1280 = vunpack.c.l.b16 %v520
        %v1281 = vunpack.c.h.b16 %v520
        %v1282 = vunpack.c.l.b16 %v521
        %v1283 = vunpack.c.h.b16 %v521
        %v1284 = vunpack.c.l.b16 %v522
        %v1285 = vunpack.c.h.b16 %v522
        %v1286 = vunpack.c.l.b16 %v523
        %v1287 = vunpack.c.h.b16 %v523
        %v1288 = vunpack.c.l.b16 %v524
        %v1289 = vunpack.c.h.b16 %v524
        %v1290 = vunpack.c.l.b16 %v525
        %v1291 = vunpack.c.h.b16 %v525
        %v1292 = vunpack.c.l.b16 %v526
        %v1293 = vunpack.c.h.b16 %v526
        %v1294 = vunpack.c.l.b16 %v527
        %v1295 = vunpack.c.h.b16 %v527
        %v1296 = vunpack.c.l.b16 %v528
        %v1297 = vunpack.c.h.b16 %v528
        %v1298 = vunpack.c.l.b16 %v529
        %v1299 = vunpack.c.h.b16 %v529
        %v1300 = vunpack.c.l.b16 %v530
        %v1301 = vunpack.c.h.b16 %v530
        %v1302 = vunpack.c.l.b16 %v531
        %v1303 = vunpack.c.h.b16 %v531
        %v1304 = vunpack.c.l.b16 %v532
        %v1305 = vunpack.c.h.b16 %v532
        %v1306 = vunpack.c.l.b16 %v533
        %v1307 = vunpack.c.h.b16 %v533
        %v1308 = vunpack.c.l.b16 %v534
        %v1309 = vunpack.c.h.b16 %v534
        %v1310 = vunpack.c.l.b16 %v535
        %v1311 = vunpack.c.h.b16 %v535
        %v1312 = vunpack.c.l.b16 %v536
        %v1313 = vunpack.c.h.b16 %v536
        %v1314 = vunpack.c.l.b16 %v537
        %v1315 = vunpack.c.h.b16 %v537
        %v1316 = vunpack.c.l.b16 %v538
        %v1317 = vunpack.c.h.b16 %v538
        %v1318 = vunpack.c.l.b16 %v539
        %v1319 = vunpack.c.h.b16 %v539
        %v1320 = vunpack.c.l.b16 %v540
        %v1321 = vunpack.c.h.b16 %v540
        %v1322 = vunpack.c.l.b16 %v541
        %v1323 = vunpack.c.h.b16 %v541
        %v1324 = vunpack.c.l.b16 %v542
        %v1325 = vunpack.c.h.b16 %v542
        %v1326 = vunpack.c.l.b16 %v543
        %v1327 = vunpack.c.h.b16 %v543
        %v1328 = vunpack.c.l.b16 %v544
        %v1329 = vunpack.c.h.b16 %v544
        %v1330 = vunpack.c.l.b16 %v545
        %v1331 = vunpack.c.h.b16 %v545
        %v1332 = vunpack.c.l.b16 %v546
        %v1333 = vunpack.c.h.b16 %v546
        %v1334 = vunpack.c.l.b16 %v547
        %v1335 = vunpack.c.h.b16 %v547
        %v1336 = vunpack.c.l.b16 %v548
        %v1337 = vunpack.c.h.b16 %v548
        %v1338 = vunpack.c.l.b16 %v549
        %v1339 = vunpack.c.h.b16 %v549
        %v1340 = vunpack.c.l.b16 %v550
        %v1341 = vunpack.c.h.b16 %v550
        %v1342 = vunpack.c.l.b16 %v551
        %v1343 = vunpack.c.h.b16 %v551
        %v1344 = vunpack.c.l.b16 %v552
        %v1345 = vunpack.c.h.b16 %v552
        %v1346 = vunpack.c.l.b16 %v553
        %v1347 = vunpack.c.h.b16 %v553
        %v1348 = vunpack.c.l.b16 %v554
        %v1349 = vunpack.c.h.b16 %v554
        %v1350 = vunpack.c.l.b16 %v555
        %v1351 = vunpack.c.h.b16 %v555
        %v1352 = vunpack.c.l.b16 %v556
        %v1353 = vunpack.c.h.b16 %v556
        %v1354 = vpack.c.b16 %v850, %v842
        %v1355 = vpack.c.b16 %v851, %v843
        %v1356 = vpack.c.b16 %v852, %v844
        %v1357 = vpack.c.b16 %v853, %v845
        %v1358 = vpack.c.b16 %v854, %v846
        %v1359 = vpack.c.b16 %v855, %v847
        %v1360 = vpack.c.b16 %v856, %v848
        %v1361 = vpack.c.b16 %v857, %v849
        %v1362 = vpack.c.b16 %v866, %v858
        %v1363 = vpack.c.b16 %v867, %v859
        %v1364 = vpack.c.b16 %v868, %v860
        %v1365 = vpack.c.b16 %v869, %v861
        %v1366 = vpack.c.b16 %v870, %v862
        %v1367 = vpack.c.b16 %v871, %v863
        %v1368 = vpack.c.b16 %v872, %v864
        %v1369 = vpack.c.b16 %v873, %v865
        %v1370 = vpack.c.b16 %v882, %v874
        %v1371 = vpack.c.b16 %v883, %v875
        %v1372 = vpack.c.b16 %v884, %v876
        %v1373 = vpack.c.b16 %v885, %v877
        %v1374 = vpack.c.b16 %v886, %v878
        %v1375 = vpack.c.b16 %v887, %v879
        %v1376 = vpack.c.b16 %v888, %v880
        %v1377 = vpack.c.b16 %v889, %v881
        %v1378 = vpack.c.b16 %v898, %v890
        %v1379 = vpack.c.b16 %v899, %v891
        %v1380 = vpack.c.b16 %v900, %v892
        %v1381 = vpack.c.b16 %v901, %v893
        %v1382 = vpack.c.b16 %v902, %v894
        %v1383 = vpack.c.b16 %v903, %v895
        %v1384 = vpack.c.b16 %v904, %v896
        %v1385 = vpack.c.b16 %v905, %v897
        %v1386 = vpack.c.b16 %v914, %v906
        %v1387 = vpack.c.b16 %v915, %v907
        %v1388 = vpack.c.b16 %v916, %v908
        %v1389 = vpack.c.b16 %v917, %v909
        %v1390 = vpack.c.b16 %v918, %v910
        %v1391 = vpack.c.b16 %v919, %v911
        %v1392 = vpack.c.b16 %v920, %v912
        %v1393 = vpack.c.b16 %v921, %v913
        %v1394 = vpack.c.b16 %v930, %v922
        %v1395 = vpack.c.b16 %v931, %v923
        %v1396 = vpack.c.b16 %v932, %v924
        %v1397 = vpack.c.b16 %v933, %v925
        %v1398 = vpack.c.b16 %v934, %v926
        %v1399 = vpack.c.b16 %v935, %v927
        %v1400 = vpack.c.b16 %v936, %v928
        %v1401 = vpack.c.b16 %v937, %v929
        %v1402 = vpack.c.b16 %v946, %v938
        %v1403 = vpack.c.b16 %v947, %v939
        %v1404 = vpack.c.b16 %v948, %v940
        %v1405 = vpack.c.b16 %v949, %v941
        %v1406 = vpack.c.b16 %v950, %v942
        %v1407 = vpack.c.b16 %v951, %v943
        %v1408 = vpack.c.b16 %v952, %v944
        %v1409 = vpack.c.b16 %v953, %v945
        %v1410 = vpack.c.b16 %v962, %v954
        %v1411 = vpack.c.b16 %v963, %v955
        %v1412 = vpack.c.b16 %v964, %v956
        %v1413 = vpack.c.b16 %v965, %v957
        %v1414 = vpack.c.b16 %v966, %v958
        %v1415 = vpack.c.b16 %v967, %v959
        %v1416 = vpack.c.b16 %v968, %v960
        %v1417 = vpack.c.b16 %v969, %v961
        %v1418 = vpack.c.b16 %v978, %v970
        %v1419 = vpack.c.b16 %v979, %v971
        %v1420 = vpack.c.b16 %v980, %v972
        %v1421 = vpack.c.b16 %v981, %v973
        %v1422 = vpack.c.b16 %v982, %v974
        %v1423 = vpack.c.b16 %v983, %v975
        %v1424 = vpack.c.b16 %v984, %v976
        %v1425 = vpack.c.b16 %v985, %v977
        %v1426 = vpack.c.b16 %v994, %v986
        %v1427 = vpack.c.b16 %v995, %v987
        %v1428 = vpack.c.b16 %v996, %v988
        %v1429 = vpack.c.b16 %v997, %v989
        %v1430 = vpack.c.b16 %v998, %v990
        %v1431 = vpack.c.b16 %v999, %v991
        %v1432 = vpack.c.b16 %v1000, %v992
        %v1433 = vpack.c.b16 %v1001, %v993
        %v1434 = vpack.c.b16 %v1010, %v1002
        %v1435 = vpack.c.b16 %v1011, %v1003
        %v1436 = vpack.c.b16 %v1012, %v1004
        %v1437 = vpack.c.b16 %v1013, %v1005
        %v1438 = vpack.c.b16 %v1014, %v1006
        %v1439 = vpack.c.b16 %v1015, %v1007
        %v1440 = vpack.c.b16 %v1016, %v1008
        %v1441 = vpack.c.b16 %v1017, %v1009
        %v1442 = vpack.c.b16 %v1026, %v1018
        %v1443 = vpack.c.b16 %v1027, %v1019
        %v1444 = vpack.c.b16 %v1028, %v1020
        %v1445 = vpack.c.b16 %v1029, %v1021
        %v1446 = vpack.c.b16 %v1030, %v1022
        %v1447 = vpack.c.b16 %v1031, %v1023
        %v1448 = vpack.c.b16 %v1032, %v1024
        %v1449 = vpack.c.b16 %v1033, %v1025
        %v1450 = vpack.c.b16 %v1042, %v1034
        %v1451 = vpack.c.b16 %v1043, %v1035
        %v1452 = vpack.c.b16 %v1044, %v1036
        %v1453 = vpack.c.b16 %v1045, %v1037
        %v1454 = vpack.c.b16 %v1046, %v1038
        %v1455 = vpack.c.b16 %v1047, %v1039
        %v1456 = vpack.c.b16 %v1048, %v1040
        %v1457 = vpack.c.b16 %v1049, %v1041
        %v1458 = vpack.c.b16 %v1058, %v1050
        %v1459 = vpack.c.b16 %v1059, %v1051
        %v1460 = vpack.c.b16 %v1060, %v1052
        %v1461 = vpack.c.b16 %v1061, %v1053
        %v1462 = vpack.c.b16 %v1062, %v1054
        %v1463 = vpack.c.b16 %v1063, %v1055
        %v1464 = vpack.c.b16 %v1064, %v1056
        %v1465 = vpack.c.b16 %v1065, %v1057
        %v1466 = vpack.c.b16 %v1074, %v1066
        %v1467 = vpack.c.b16 %v1075, %v1067
        %v1468 = vpack.c.b16 %v1076, %v1068
        %v1469 = vpack.c.b16 %v1077, %v1069
        %v1470 = vpack.c.b16 %v1078, %v1070
        %v1471 = vpack.c.b16 %v1079, %v1071
        %v1472 = vpack.c.b16 %v1080, %v1072
        %v1473 = vpack.c.b16 %v1081, %v1073
        %v1474 = vpack.c.b16 %v1090, %v1082
        %v1475 = vpack.c.b16 %v1091, %v1083
        %v1476 = vpack.c.b16 %v1092, %v1084
        %v1477 = vpack.c.b16 %v1093, %v1085
        %v1478 = vpack.c.b16 %v1094, %v1086
        %v1479 = vpack.c.b16 %v1095, %v1087
        %v1480 = vpack.c.b16 %v1096, %v1088
        %v1481 = vpack.c.b16 %v1097, %v1089
        %v1482 = vpack.c.b16 %v1106, %v1098
        %v1483 = vpack.c.b16 %v1107, %v1099
        %v1484 = vpack.c.b16 %v1108, %v1100
        %v1485 = vpack.c.b16 %v1109, %v1101
        %v1486 = vpack.c.b16 %v1110, %v1102
        %v1487 = vpack.c.b16 %v1111, %v1103
        %v1488 = vpack.c.b16 %v1112, %v1104
        %v1489 = vpack.c.b16 %v1113, %v1105
        %v1490 = vpack.c.b16 %v1122, %v1114
        %v1491 = vpack.c.b16 %v1123, %v1115
        %v1492 = vpack.c.b16 %v1124, %v1116
        %v1493 = vpack.c.b16 %v1125, %v1117
        %v1494 = vpack.c.b16 %v1126, %v1118
        %v1495 = vpack.c.b16 %v1127, %v1119
        %v1496 = vpack.c.b16 %v1128, %v1120
        %v1497 = vpack.c.b16 %v1129, %v1121
        %v1498 = vpack.c.b16 %v1138, %v1130
        %v1499 = vpack.c.b16 %v1139, %v1131
        %v1500 = vpack.c.b16 %v1140, %v1132
        %v1501 = vpack.c.b16 %v1141, %v1133
        %v1502 = vpack.c.b16 %v1142, %v1134
        %v1503 = vpack.c.b16 %v1143, %v1135
        %v1504 = vpack.c.b16 %v1144, %v1136
        %v1505 = vpack.c.b16 %v1145, %v1137
        %v1506 = vpack.c.b16 %v1154, %v1146
        %v1507 = vpack.c.b16 %v1155, %v1147
        %v1508 = vpack.c.b16 %v1156, %v1148
        %v1509 = vpack.c.b16 %v1157, %v1149
        %v1510 = vpack.c.b16 %v1158, %v1150
        %v1511 = vpack.c.b16 %v1159, %v1151
        %v1512 = vpack.c.b16 %v1160, %v1152
        %v1513 = vpack.c.b16 %v1161, %v1153
        %v1514 = vpack.c.b16 %v1170, %v1162
        %v1515 = vpack.c.b16 %v1171, %v1163
        %v1516 = vpack.c.b16 %v1172, %v1164
        %v1517 = vpack.c.b16 %v1173, %v1165
        %v1518 = vpack.c.b16 %v1174, %v1166
        %v1519 = vpack.c.b16 %v1175, %v1167
        %v1520 = vpack.c.b16 %v1176, %v1168
        %v1521 = vpack.c.b16 %v1177, %v1169
        %v1522 = vpack.c.b16 %v1186, %v1178
        %v1523 = vpack.c.b16 %v1187, %v1179
        %v1524 = vpack.c.b16 %v1188, %v1180
        %v1525 = vpack.c.b16 %v1189, %v1181
        %v1526 = vpack.c.b16 %v1190, %v1182
        %v1527 = vpack.c.b16 %v1191, %v1183
        %v1528 = vpack.c.b16 %v1192, %v1184
        %v1529 = vpack.c.b16 %v1193, %v1185
        %v1530 = vpack.c.b16 %v1202, %v1194
        %v1531 = vpack.c.b16 %v1203, %v1195
        %v1532 = vpack.c.b16 %v1204, %v1196
        %v1533 = vpack.c.b16 %v1205, %v1197
        %v1534 = vpack.c.b16 %v1206, %v1198
        %v1535 = vpack.c.b16 %v1207, %v1199
        %v1536 = vpack.c.b16 %v1208, %v1200
        %v1537 = vpack.c.b16 %v1209, %v1201
        %v1538 = vpack.c.b16 %v1218, %v1210
        %v1539 = vpack.c.b16 %v1219, %v1211
        %v1540 = vpack.c.b16 %v1220, %v1212
        %v1541 = vpack.c.b16 %v1221, %v1213
        %v1542 = vpack.c.b16 %v1222, %v1214
        %v1543 = vpack.c.b16 %v1223, %v1215
        %v1544 = vpack.c.b16 %v1224, %v1216
        %v1545 = vpack.c.b16 %v1225, %v1217
        %v1546 = vpack.c.b16 %v1234, %v1226
        %v1547 = vpack.c.b16 %v1235, %v1227
        %v1548 = vpack.c.b16 %v1236, %v1228
        %v1549 = vpack.c.b16 %v1237, %v1229
        %v1550 = vpack.c.b16 %v1238, %v1230
        %v1551 = vpack.c.b16 %v1239, %v1231
        %v1552 = vpack.c.b16 %v1240, %v1232
        %v1553 = vpack.c.b16 %v1241, %v1233
        %v1554 = vpack.c.b16 %v1250, %v1242
        %v1555 = vpack.c.b16 %v1251, %v1243
        %v1556 = vpack.c.b16 %v1252, %v1244
        %v1557 = vpack.c.b16 %v1253, %v1245
        %v1558 = vpack.c.b16 %v1254, %v1246
        %v1559 = vpack.c.b16 %v1255, %v1247
        %v1560 = vpack.c.b16 %v1256, %v1248
        %v1561 = vpack.c.b16 %v1257, %v1249
        %v1562 = vpack.c.b16 %v1266, %v1258
        %v1563 = vpack.c.b16 %v1267, %v1259
        %v1564 = vpack.c.b16 %v1268, %v1260
        %v1565 = vpack.c.b16 %v1269, %v1261
        %v1566 = vpack.c.b16 %v1270, %v1262
        %v1567 = vpack.c.b16 %v1271, %v1263
        %v1568 = vpack.c.b16 %v1272, %v1264
        %v1569 = vpack.c.b16 %v1273, %v1265
        %v1570 = vpack.c.b16 %v1282, %v1274
        %v1571 = vpack.c.b16 %v1283, %v1275
        %v1572 = vpack.c.b16 %v1284, %v1276
        %v1573 = vpack.c.b16 %v1285, %v1277
        %v1574 = vpack.c.b16 %v1286, %v1278
        %v1575 = vpack.c.b16 %v1287, %v1279
        %v1576 = vpack.c.b16 %v1288, %v1280
        %v1577 = vpack.c.b16 %v1289, %v1281
        %v1578 = vpack.c.b16 %v1298, %v1290
        %v1579 = vpack.c.b16 %v1299, %v1291
        %v1580 = vpack.c.b16 %v1300, %v1292
        %v1581 = vpack.c.b16 %v1301, %v1293
        %v1582 = vpack.c.b16 %v1302, %v1294
        %v1583 = vpack.c.b16 %v1303, %v1295
        %v1584 = vpack.c.b16 %v1304, %v1296
        %v1585 = vpack.c.b16 %v1305, %v1297
        %v1586 = vpack.c.b16 %v1314, %v1306
        %v1587 = vpack.c.b16 %v1315, %v1307
        %v1588 = vpack.c.b16 %v1316, %v1308
        %v1589 = vpack.c.b16 %v1317, %v1309
        %v1590 = vpack.c.b16 %v1318, %v1310
        %v1591 = vpack.c.b16 %v1319, %v1311
        %v1592 = vpack.c.b16 %v1320, %v1312
        %v1593 = vpack.c.b16 %v1321, %v1313
        %v1594 = vpack.c.b16 %v1330, %v1322
        %v1595 = vpack.c.b16 %v1331, %v1323
        %v1596 = vpack.c.b16 %v1332, %v1324
        %v1597 = vpack.c.b16 %v1333, %v1325
        %v1598 = vpack.c.b16 %v1334, %v1326
        %v1599 = vpack.c.b16 %v1335, %v1327
        %v1600 = vpack.c.b16 %v1336, %v1328
        %v1601 = vpack.c.b16 %v1337, %v1329
        %v1602 = vpack.c.b16 %v1346, %v1338
        %v1603 = vpack.c.b16 %v1347, %v1339
        %v1604 = vpack.c.b16 %v1348, %v1340
        %v1605 = vpack.c.b16 %v1349, %v1341
        %v1606 = vpack.c.b16 %v1350, %v1342
        %v1607 = vpack.c.b16 %v1351, %v1343
        %v1608 = vpack.c.b16 %v1352, %v1344
        %v1609 = vpack.c.b16 %v1353, %v1345
        %1866 = vmatprep.subr.bf16.mxu0 %v1355
        %1867 = vmatpush1.bf16.msra.mxu0 %v1354
        %1868 = vmatprep.subr.bf16.mxu0 %v1363
        %1869 = vmatpush1.bf16.msra.mxu0 %v1362
        %1870 = vmatprep.subr.bf16.mxu0 %v1371
        %1871 = vmatpush1.bf16.msra.mxu0 %v1370
        %1872 = vmatprep.subr.bf16.mxu0 %v1379
        %1873 = vmatpush1.bf16.msra.mxu0 %v1378
        %1874 = vmatprep.subr.bf16.mxu0 %v1387
        %1875 = vmatpush1.bf16.msra.mxu0 %v1386
        %1876 = vmatprep.subr.bf16.mxu0 %v1395
        %1877 = vmatpush1.bf16.msra.mxu0 %v1394
        %1878 = vmatprep.subr.bf16.mxu0 %v1403
        %1879 = vmatpush1.bf16.msra.mxu0 %v1402
        %1880 = vmatprep.subr.bf16.mxu0 %v1411
        %1881 = vmatpush1.bf16.msra.mxu0 %v1410
        %1882 = vmatprep.subr.bf16.mxu0 %v1419
        %1883 = vmatpush1.bf16.msra.mxu0 %v1418
        %1884 = vmatprep.subr.bf16.mxu0 %v1427
        %1885 = vmatpush1.bf16.msra.mxu0 %v1426
        %1886 = vmatprep.subr.bf16.mxu0 %v1435
        %1887 = vmatpush1.bf16.msra.mxu0 %v1434
        %1888 = vmatprep.subr.bf16.mxu0 %v1443
        %1889 = vmatpush1.bf16.msra.mxu0 %v1442
        %1890 = vmatprep.subr.bf16.mxu0 %v1451
        %1891 = vmatpush1.bf16.msra.mxu0 %v1450
        %1892 = vmatprep.subr.bf16.mxu0 %v1459
        %1893 = vmatpush1.bf16.msra.mxu0 %v1458
        %1894 = vmatprep.subr.bf16.mxu0 %v1467
        %1895 = vmatpush1.bf16.msra.mxu0 %v1466
        %1896 = vmatprep.subr.bf16.mxu0 %v1475
        %1897 = vmatpush1.bf16.msra.mxu0 %v1474
        %1898 = vmatprep.mubr.bf16.mxu0 %v579
        %1899 = vmatmul.mubr.bf16.gmra.mrb[0].mxu0 %v572
        %v1900 = vpop.f32.mrb[0].mxu0
        %v1901 = vadd.f32 0.0, %v1900
        %v1902 = vpop.f32.mrb[0].mxu0
        %v1903 = vadd.f32 0.0, %v1902
        %v1904 = vpop.f32.mrb[0].mxu0
        %v1905 = vpop.f32.mrb[0].mxu0
        %1906 = vdwg.mxu0
        %1907 = vmatprep.subr.bf16.mxu0 %v1483
        %1908 = vmatpush1.bf16.msra.mxu0 %v1482
        %1909 = vmatprep.subr.bf16.mxu0 %v1491
        %1910 = vmatpush1.bf16.msra.mxu0 %v1490
        %1911 = vmatprep.subr.bf16.mxu0 %v1499
        %1912 = vmatpush1.bf16.msra.mxu0 %v1498
        %1913 = vmatprep.subr.bf16.mxu0 %v1507
        %1914 = vmatpush1.bf16.msra.mxu0 %v1506
        %1915 = vmatprep.subr.bf16.mxu0 %v1515
        %1916 = vmatpush1.bf16.msra.mxu0 %v1514
        %1917 = vmatprep.subr.bf16.mxu0 %v1523
        %1918 = vmatpush1.bf16.msra.mxu0 %v1522
        %1919 = vmatprep.subr.bf16.mxu0 %v1531
        %1920 = vmatpush1.bf16.msra.mxu0 %v1530
        %1921 = vmatprep.subr.bf16.mxu0 %v1539
        %1922 = vmatpush1.bf16.msra.mxu0 %v1538
        %1923 = vmatprep.subr.bf16.mxu0 %v1547
        %1924 = vmatpush1.bf16.msra.mxu0 %v1546
        %1925 = vmatprep.subr.bf16.mxu0 %v1555
        %1926 = vmatpush1.bf16.msra.mxu0 %v1554
        %1927 = vmatprep.subr.bf16.mxu0 %v1563
        %1928 = vmatpush1.bf16.msra.mxu0 %v1562
        %1929 = vmatprep.subr.bf16.mxu0 %v1571
        %1930 = vmatpush1.bf16.msra.mxu0 %v1570
        %1931 = vmatprep.subr.bf16.mxu0 %v1579
        %1932 = vmatpush1.bf16.msra.mxu0 %v1578
        %1933 = vmatprep.subr.bf16.mxu0 %v1587
        %1934 = vmatpush1.bf16.msra.mxu0 %v1586
        %1935 = vmatprep.subr.bf16.mxu0 %v1595
        %1936 = vmatpush1.bf16.msra.mxu0 %v1594
        %1937 = vmatprep.subr.bf16.mxu0 %v1603
        %1938 = vmatpush1.bf16.msra.mxu0 %v1602
        %1939 = vmatprep.mubr.bf16.mxu0 %v581
        %1940 = vmatmul.mubr.bf16.gmra.mrb[0].mxu0 %v580
        %v1941 = vpop.f32.mrb[0].mxu0
        %v1942 = vadd.f32 %v1901, %v1941
        %v1943 = vpop.f32.mrb[0].mxu0
        %v1944 = vadd.f32 %v1903, %v1943
        %v1945 = vpop.f32.mrb[0].mxu0
        %v1946 = vpop.f32.mrb[0].mxu0
        %1947 = vdwg.mxu0
        %1948 = vmatprep.subr.bf16.mxu0 %v1357
        %1949 = vmatpush1.bf16.msra.mxu0 %v1356
        %1950 = vmatprep.subr.bf16.mxu0 %v1365
        %1951 = vmatpush1.bf16.msra.mxu0 %v1364
        %1952 = vmatprep.subr.bf16.mxu0 %v1373
        %1953 = vmatpush1.bf16.msra.mxu0 %v1372
        %1954 = vmatprep.subr.bf16.mxu0 %v1381
        %1955 = vmatpush1.bf16.msra.mxu0 %v1380
        %1956 = vmatprep.subr.bf16.mxu0 %v1389
        %1957 = vmatpush1.bf16.msra.mxu0 %v1388
        %1958 = vmatprep.subr.bf16.mxu0 %v1397
        %1959 = vmatpush1.bf16.msra.mxu0 %v1396
        %1960 = vmatprep.subr.bf16.mxu0 %v1405
        %1961 = vmatpush1.bf16.msra.mxu0 %v1404
        %1962 = vmatprep.subr.bf16.mxu0 %v1413
        %1963 = vmatpush1.bf16.msra.mxu0 %v1412
        %1964 = vmatprep.subr.bf16.mxu0 %v1421
        %1965 = vmatpush1.bf16.msra.mxu0 %v1420
        %1966 = vmatprep.subr.bf16.mxu0 %v1429
        %1967 = vmatpush1.bf16.msra.mxu0 %v1428
        %1968 = vmatprep.subr.bf16.mxu0 %v1437
        %1969 = vmatpush1.bf16.msra.mxu0 %v1436
        %1970 = vmatprep.subr.bf16.mxu0 %v1445
        %1971 = vmatpush1.bf16.msra.mxu0 %v1444
        %1972 = vmatprep.subr.bf16.mxu0 %v1453
        %1973 = vmatpush1.bf16.msra.mxu0 %v1452
        %1974 = vmatprep.subr.bf16.mxu0 %v1461
        %1975 = vmatpush1.bf16.msra.mxu0 %v1460
        %1976 = vmatprep.subr.bf16.mxu0 %v1469
        %1977 = vmatpush1.bf16.msra.mxu0 %v1468
        %1978 = vmatprep.subr.bf16.mxu0 %v1477
        %1979 = vmatpush1.bf16.msra.mxu0 %v1476
        %1980 = vmatprep.mubr.bf16.mxu0 %v579
        %1981 = vmatmul.mubr.bf16.gmra.mrb[0].mxu0 %v572
        %v1982 = vpop.f32.mrb[0].mxu0
        %v1983 = vadd.f32 0.0, %v1982
        %v1984 = vpop.f32.mrb[0].mxu0
        %v1985 = vadd.f32 0.0, %v1984
        %v1986 = vpop.f32.mrb[0].mxu0
        %v1987 = vpop.f32.mrb[0].mxu0
        %1988 = vdwg.mxu0
        %1989 = vmatprep.subr.bf16.mxu0 %v1485
        %1990 = vmatpush1.bf16.msra.mxu0 %v1484
        %1991 = vmatprep.subr.bf16.mxu0 %v1493
        %1992 = vmatpush1.bf16.msra.mxu0 %v1492
        %1993 = vmatprep.subr.bf16.mxu0 %v1501
        %1994 = vmatpush1.bf16.msra.mxu0 %v1500
        %1995 = vmatprep.subr.bf16.mxu0 %v1509
        %1996 = vmatpush1.bf16.msra.mxu0 %v1508
        %1997 = vmatprep.subr.bf16.mxu0 %v1517
        %1998 = vmatpush1.bf16.msra.mxu0 %v1516
        %1999 = vmatprep.subr.bf16.mxu0 %v1525
        %2000 = vmatpush1.bf16.msra.mxu0 %v1524
        %2001 = vmatprep.subr.bf16.mxu0 %v1533
        %2002 = vmatpush1.bf16.msra.mxu0 %v1532
        %2003 = vmatprep.subr.bf16.mxu0 %v1541
        %2004 = vmatpush1.bf16.msra.mxu0 %v1540
        %2005 = vmatprep.subr.bf16.mxu0 %v1549
        %2006 = vmatpush1.bf16.msra.mxu0 %v1548
        %2007 = vmatprep.subr.bf16.mxu0 %v1557
        %2008 = vmatpush1.bf16.msra.mxu0 %v1556
        %2009 = vmatprep.subr.bf16.mxu0 %v1565
        %2010 = vmatpush1.bf16.msra.mxu0 %v1564
        %2011 = vmatprep.subr.bf16.mxu0 %v1573
        %2012 = vmatpush1.bf16.msra.mxu0 %v1572
        %2013 = vmatprep.subr.bf16.mxu0 %v1581
        %2014 = vmatpush1.bf16.msra.mxu0 %v1580
        %2015 = vmatprep.subr.bf16.mxu0 %v1589
        %2016 = vmatpush1.bf16.msra.mxu0 %v1588
        %2017 = vmatprep.subr.bf16.mxu0 %v1597
        %2018 = vmatpush1.bf16.msra.mxu0 %v1596
        %2019 = vmatprep.subr.bf16.mxu0 %v1605
        %2020 = vmatpush1.bf16.msra.mxu0 %v1604
        %2021 = vmatprep.mubr.bf16.mxu0 %v581
        %2022 = vmatmul.mubr.bf16.gmra.mrb[0].mxu0 %v580
        %v2023 = vpop.f32.mrb[0].mxu0
        %v2024 = vadd.f32 %v1983, %v2023
        %v2025 = vpop.f32.mrb[0].mxu0
        %v2026 = vadd.f32 %v1985, %v2025
        %v2027 = vpop.f32.mrb[0].mxu0
        %v2028 = vpop.f32.mrb[0].mxu0
        %2029 = vdwg.mxu0
        %2030 = vmatprep.subr.bf16.mxu0 %v1359
        %2031 = vmatpush1.bf16.msra.mxu0 %v1358
        %2032 = vmatprep.subr.bf16.mxu0 %v1367
        %2033 = vmatpush1.bf16.msra.mxu0 %v1366
        %2034 = vmatprep.subr.bf16.mxu0 %v1375
        %2035 = vmatpush1.bf16.msra.mxu0 %v1374
        %2036 = vmatprep.subr.bf16.mxu0 %v1383
        %2037 = vmatpush1.bf16.msra.mxu0 %v1382
        %2038 = vmatprep.subr.bf16.mxu0 %v1391
        %2039 = vmatpush1.bf16.msra.mxu0 %v1390
        %2040 = vmatprep.subr.bf16.mxu0 %v1399
        %2041 = vmatpush1.bf16.msra.mxu0 %v1398
        %2042 = vmatprep.subr.bf16.mxu0 %v1407
        %2043 = vmatpush1.bf16.msra.mxu0 %v1406
        %2044 = vmatprep.subr.bf16.mxu0 %v1415
        %2045 = vmatpush1.bf16.msra.mxu0 %v1414
        %2046 = vmatprep.subr.bf16.mxu0 %v1423
        %2047 = vmatpush1.bf16.msra.mxu0 %v1422
        %2048 = vmatprep.subr.bf16.mxu0 %v1431
        %2049 = vmatpush1.bf16.msra.mxu0 %v1430
        %2050 = vmatprep.subr.bf16.mxu0 %v1439
        %2051 = vmatpush1.bf16.msra.mxu0 %v1438
        %2052 = vmatprep.subr.bf16.mxu0 %v1447
        %2053 = vmatpush1.bf16.msra.mxu0 %v1446
        %2054 = vmatprep.subr.bf16.mxu0 %v1455
        %2055 = vmatpush1.bf16.msra.mxu0 %v1454
        %2056 = vmatprep.subr.bf16.mxu0 %v1463
        %2057 = vmatpush1.bf16.msra.mxu0 %v1462
        %2058 = vmatprep.subr.bf16.mxu0 %v1471
        %2059 = vmatpush1.bf16.msra.mxu0 %v1470
        %2060 = vmatprep.subr.bf16.mxu0 %v1479
        %2061 = vmatpush1.bf16.msra.mxu0 %v1478
        %2062 = vmatprep.mubr.bf16.mxu0 %v579
        %2063 = vmatmul.mubr.bf16.gmra.mrb[0].mxu0 %v572
        %v2064 = vpop.f32.mrb[0].mxu0
        %v2065 = vadd.f32 0.0, %v2064
        %v2066 = vpop.f32.mrb[0].mxu0
        %v2067 = vadd.f32 0.0, %v2066
        %v2068 = vpop.f32.mrb[0].mxu0
        %v2069 = vpop.f32.mrb[0].mxu0
        %2070 = vdwg.mxu0
        %2071 = vmatprep.subr.bf16.mxu0 %v1487
        %2072 = vmatpush1.bf16.msra.mxu0 %v1486
        %2073 = vmatprep.subr.bf16.mxu0 %v1495
        %2074 = vmatpush1.bf16.msra.mxu0 %v1494
        %2075 = vmatprep.subr.bf16.mxu0 %v1503
        %2076 = vmatpush1.bf16.msra.mxu0 %v1502
        %2077 = vmatprep.subr.bf16.mxu0 %v1511
        %2078 = vmatpush1.bf16.msra.mxu0 %v1510
        %2079 = vmatprep.subr.bf16.mxu0 %v1519
        %2080 = vmatpush1.bf16.msra.mxu0 %v1518
        %2081 = vmatprep.subr.bf16.mxu0 %v1527
        %2082 = vmatpush1.bf16.msra.mxu0 %v1526
        %2083 = vmatprep.subr.bf16.mxu0 %v1535
        %2084 = vmatpush1.bf16.msra.mxu0 %v1534
        %2085 = vmatprep.subr.bf16.mxu0 %v1543
        %2086 = vmatpush1.bf16.msra.mxu0 %v1542
        %2087 = vmatprep.subr.bf16.mxu0 %v1551
        %2088 = vmatpush1.bf16.msra.mxu0 %v1550
        %2089 = vmatprep.subr.bf16.mxu0 %v1559
        %2090 = vmatpush1.bf16.msra.mxu0 %v1558
        %2091 = vmatprep.subr.bf16.mxu0 %v1567
        %2092 = vmatpush1.bf16.msra.mxu0 %v1566
        %2093 = vmatprep.subr.bf16.mxu0 %v1575
        %2094 = vmatpush1.bf16.msra.mxu0 %v1574
        %2095 = vmatprep.subr.bf16.mxu0 %v1583
        %2096 = vmatpush1.bf16.msra.mxu0 %v1582
        %2097 = vmatprep.subr.bf16.mxu0 %v1591
        %2098 = vmatpush1.bf16.msra.mxu0 %v1590
        %2099 = vmatprep.subr.bf16.mxu0 %v1599
        %2100 = vmatpush1.bf16.msra.mxu0 %v1598
        %2101 = vmatprep.subr.bf16.mxu0 %v1607
        %2102 = vmatpush1.bf16.msra.mxu0 %v1606
        %2103 = vmatprep.mubr.bf16.mxu0 %v581
        %2104 = vmatmul.mubr.bf16.gmra.mrb[0].mxu0 %v580
        %v2105 = vpop.f32.mrb[0].mxu0
        %v2106 = vadd.f32 %v2065, %v2105
        %v2107 = vpop.f32.mrb[0].mxu0
        %v2108 = vadd.f32 %v2067, %v2107
        %v2109 = vpop.f32.mrb[0].mxu0
        %v2110 = vpop.f32.mrb[0].mxu0
        %2111 = vdwg.mxu0
        %2112 = vmatprep.subr.bf16.mxu0 %v1361
        %2113 = vmatpush1.bf16.msra.mxu0 %v1360
        %2114 = vmatprep.subr.bf16.mxu0 %v1369
        %2115 = vmatpush1.bf16.msra.mxu0 %v1368
        %2116 = vmatprep.subr.bf16.mxu0 %v1377
        %2117 = vmatpush1.bf16.msra.mxu0 %v1376
        %2118 = vmatprep.subr.bf16.mxu0 %v1385
        %2119 = vmatpush1.bf16.msra.mxu0 %v1384
        %2120 = vmatprep.subr.bf16.mxu0 %v1393
        %2121 = vmatpush1.bf16.msra.mxu0 %v1392
        %2122 = vmatprep.subr.bf16.mxu0 %v1401
        %2123 = vmatpush1.bf16.msra.mxu0 %v1400
        %2124 = vmatprep.subr.bf16.mxu0 %v1409
        %2125 = vmatpush1.bf16.msra.mxu0 %v1408
        %2126 = vmatprep.subr.bf16.mxu0 %v1417
        %2127 = vmatpush1.bf16.msra.mxu0 %v1416
        %2128 = vmatprep.subr.bf16.mxu0 %v1425
        %2129 = vmatpush1.bf16.msra.mxu0 %v1424
        %2130 = vmatprep.subr.bf16.mxu0 %v1433
        %2131 = vmatpush1.bf16.msra.mxu0 %v1432
        %2132 = vmatprep.subr.bf16.mxu0 %v1441
        %2133 = vmatpush1.bf16.msra.mxu0 %v1440
        %2134 = vmatprep.subr.bf16.mxu0 %v1449
        %2135 = vmatpush1.bf16.msra.mxu0 %v1448
        %2136 = vmatprep.subr.bf16.mxu0 %v1457
        %2137 = vmatpush1.bf16.msra.mxu0 %v1456
        %2138 = vmatprep.subr.bf16.mxu0 %v1465
        %2139 = vmatpush1.bf16.msra.mxu0 %v1464
        %2140 = vmatprep.subr.bf16.mxu0 %v1473
        %2141 = vmatpush1.bf16.msra.mxu0 %v1472
        %2142 = vmatprep.subr.bf16.mxu0 %v1481
        %2143 = vmatpush1.bf16.msra.mxu0 %v1480
        %2144 = vmatprep.mubr.bf16.mxu0 %v579
        %2145 = vmatmul.mubr.bf16.gmra.mrb[0].mxu0 %v572
        %v2146 = vpop.f32.mrb[0].mxu0
        %v2147 = vadd.f32 0.0, %v2146
        %v2148 = vpop.f32.mrb[0].mxu0
        %v2149 = vadd.f32 0.0, %v2148
        %v2150 = vpop.f32.mrb[0].mxu0
        %v2151 = vpop.f32.mrb[0].mxu0
        %2152 = vdwg.mxu0
        %2153 = vmatprep.subr.bf16.mxu0 %v1489
        %2154 = vmatpush1.bf16.msra.mxu0 %v1488
        %2155 = vmatprep.subr.bf16.mxu0 %v1497
        %2156 = vmatpush1.bf16.msra.mxu0 %v1496
        %2157 = vmatprep.subr.bf16.mxu0 %v1505
        %2158 = vmatpush1.bf16.msra.mxu0 %v1504
        %2159 = vmatprep.subr.bf16.mxu0 %v1513
        %2160 = vmatpush1.bf16.msra.mxu0 %v1512
        %2161 = vmatprep.subr.bf16.mxu0 %v1521
        %2162 = vmatpush1.bf16.msra.mxu0 %v1520
        %2163 = vmatprep.subr.bf16.mxu0 %v1529
        %2164 = vmatpush1.bf16.msra.mxu0 %v1528
        %2165 = vmatprep.subr.bf16.mxu0 %v1537
        %2166 = vmatpush1.bf16.msra.mxu0 %v1536
        %2167 = vmatprep.subr.bf16.mxu0 %v1545
        %2168 = vmatpush1.bf16.msra.mxu0 %v1544
        %2169 = vmatprep.subr.bf16.mxu0 %v1553
        %2170 = vmatpush1.bf16.msra.mxu0 %v1552
        %2171 = vmatprep.subr.bf16.mxu0 %v1561
        %2172 = vmatpush1.bf16.msra.mxu0 %v1560
        %2173 = vmatprep.subr.bf16.mxu0 %v1569
        %2174 = vmatpush1.bf16.msra.mxu0 %v1568
        %2175 = vmatprep.subr.bf16.mxu0 %v1577
        %2176 = vmatpush1.bf16.msra.mxu0 %v1576
        %2177 = vmatprep.subr.bf16.mxu0 %v1585
        %2178 = vmatpush1.bf16.msra.mxu0 %v1584
        %2179 = vmatprep.subr.bf16.mxu0 %v1593
        %2180 = vmatpush1.bf16.msra.mxu0 %v1592
        %2181 = vmatprep.subr.bf16.mxu0 %v1601
        %2182 = vmatpush1.bf16.msra.mxu0 %v1600
        %2183 = vmatprep.subr.bf16.mxu0 %v1609
        %2184 = vmatpush1.bf16.msra.mxu0 %v1608
        %2185 = vmatprep.mubr.bf16.mxu0 %v581
        %2186 = vmatmul.mubr.bf16.gmra.mrb[0].mxu0 %v580
        %v2187 = vpop.f32.mrb[0].mxu0
        %v2188 = vadd.f32 %v2147, %v2187
        %v2189 = vpop.f32.mrb[0].mxu0
        %v2190 = vadd.f32 %v2149, %v2189
        %v2191 = vpop.f32.mrb[0].mxu0
        %v2192 = vpop.f32.mrb[0].mxu0
        %2193 = vdwg.mxu0
        %v2202 = vcombine.low %v1942, %v1944
        %v2203 = vcombine.low %v2024, %v2026
        %v2205 = vunpack.c.l.s4 1983009808
        %v2206 = vunpack.c.0.s8 %v2205
        %v2207 = vlaneseq
        %v2208 = vshrl.u32 %v2207, 7
        %v2209 = vsub.s32 %v2206, %v2208
        %v2210 = vrot.slane %v2202, %v2209
        %v2212 = vunpack.c.l.s4 1983009808
        %v2213 = vunpack.c.0.s8 %v2212
        %v2214 = vlaneseq
        %v2215 = vshrl.u32 %v2214, 7
        %v2216 = vsub.s32 %v2213, %v2215
        %v2217 = vrot.slane %v2203, %v2216
        %v2218 = vcombine.low %v2210, %v2217
        %v2219 = vcombine.low %v2106, %v2108
        %v2220 = vcombine.low %v2188, %v2190
        %v2222 = vunpack.c.l.s4 1983009808
        %v2223 = vunpack.c.0.s8 %v2222
        %v2224 = vlaneseq
        %v2225 = vshrl.u32 %v2224, 7
        %v2226 = vsub.s32 %v2223, %v2225
        %v2227 = vrot.slane %v2219, %v2226
        %v2229 = vunpack.c.l.s4 1983009808
        %v2230 = vunpack.c.0.s8 %v2229
        %v2231 = vlaneseq
        %v2232 = vshrl.u32 %v2231, 7
        %v2233 = vsub.s32 %v2230, %v2232
        %v2234 = vrot.slane %v2220, %v2233
        %v2235 = vcombine.low %v2227, %v2234
        %v2238 = vadd.f32 %v298, %v2218
        %v2239 = vadd.f32 %v299, %v2235
        %2240 = vst [vmem:[#allocation2] sm:$0xff] %v2238
        %2241 = vst [vmem:[#allocation2 + $0x8] sm:$0xff] %v2239
        %p2242 = scmp.eq.s32.totalorder %s22, 1
        // Predicated region
        $region61: #{my_ensemble_forward.1} parent=39 // pred_check
          %p2243 = pneg %p2242
        $region62: #{my_ensemble_forward.1} parent=39 // pred_check_branch
          %2245 = sbr.rel (%p2243) target = $region64
        $region63: #{my_ensemble_forward.1} parent=39 // pred_region
          %v2246 = vld [vmem:[#allocation2] sm:$0xff]
          %v2247 = vld [vmem:[#allocation2 + $0x8] sm:$0xff]
          %v2248 = vld [vmem:[#allocation6] sm:$0xff]
          %v2250 = vlaneseq
          %v2251 = vshrl.u32 %v2250, 7
          %v2252 = vsub.s32 0, %v2251
          %v2253 = vrot.slane %v2248, %v2252
          %v2254 = vlaneseq
          %v2255 = vshrl.u32 %v2254, 7
          %v2256 = vsub.s32 1, %v2255
          %v2257 = vrot.slane %v2248, %v2256
          %v2258 = vlaneseq
          %v2259 = vshrl.u32 %v2258, 7
          %v2260 = vsub.s32 2, %v2259
          %v2261 = vrot.slane %v2248, %v2260
          %v2262 = vlaneseq
          %v2263 = vshrl.u32 %v2262, 7
          %v2264 = vsub.s32 3, %v2263
          %v2265 = vrot.slane %v2248, %v2264
          %v2266 = vlaneseq
          %v2267 = vshrl.u32 %v2266, 7
          %v2268 = vsub.s32 4, %v2267
          %v2269 = vrot.slane %v2248, %v2268
          %v2270 = vlaneseq
          %v2271 = vshrl.u32 %v2270, 7
          %v2272 = vsub.s32 5, %v2271
          %v2273 = vrot.slane %v2248, %v2272
          %v2274 = vlaneseq
          %v2275 = vshrl.u32 %v2274, 7
          %v2276 = vsub.s32 6, %v2275
          %v2277 = vrot.slane %v2248, %v2276
          %v2278 = vlaneseq
          %v2279 = vshrl.u32 %v2278, 7
          %v2280 = vsub.s32 7, %v2279
          %v2281 = vrot.slane %v2248, %v2280
          %v2282 = vcombine.low %v2253, %v2257
          %v2283 = vcombine.low %v2261, %v2265
          %v2285 = vunpack.c.l.s4 1983009808
          %v2286 = vunpack.c.0.s8 %v2285
          %v2287 = vlaneseq
          %v2288 = vshrl.u32 %v2287, 7
          %v2289 = vsub.s32 %v2286, %v2288
          %v2290 = vrot.slane %v2282, %v2289
          %v2292 = vunpack.c.l.s4 1983009808
          %v2293 = vunpack.c.0.s8 %v2292
          %v2294 = vlaneseq
          %v2295 = vshrl.u32 %v2294, 7
          %v2296 = vsub.s32 %v2293, %v2295
          %v2297 = vrot.slane %v2283, %v2296
          %v2298 = vcombine.low %v2290, %v2297
          %v2299 = vcombine.low %v2269, %v2273
          %v2300 = vcombine.low %v2277, %v2281
          %v2302 = vunpack.c.l.s4 1983009808
          %v2303 = vunpack.c.0.s8 %v2302
          %v2304 = vlaneseq
          %v2305 = vshrl.u32 %v2304, 7
          %v2306 = vsub.s32 %v2303, %v2305
          %v2307 = vrot.slane %v2299, %v2306
          %v2309 = vunpack.c.l.s4 1983009808
          %v2310 = vunpack.c.0.s8 %v2309
          %v2311 = vlaneseq
          %v2312 = vshrl.u32 %v2311, 7
          %v2313 = vsub.s32 %v2310, %v2312
          %v2314 = vrot.slane %v2300, %v2313
          %v2315 = vcombine.low %v2307, %v2314
          %v2318 = vadd.f32 %v2246, %v2298
          %v2319 = vadd.f32 %v2247, %v2315
          %v2320 = vld [vmem:[#allocation8] sm:$0xff]
          %v2321 = vld [vmem:[#allocation8 + $0x8] sm:$0xff]
          %v2322 = vld [vmem:[#allocation8 + $0x10] sm:$0xff]
          %v2323 = vld [vmem:[#allocation8 + $0x18] sm:$0xff]
          %v2324 = vld [vmem:[#allocation8 + $0x20] sm:$0xff]
          %v2325 = vld [vmem:[#allocation8 + $0x28] sm:$0xff]
          %v2326 = vld [vmem:[#allocation8 + $0x30] sm:$0xff]
          %v2327 = vld [vmem:[#allocation8 + $0x38] sm:$0xff]
          %v2328 = vld [vmem:[#allocation8 + $0x40] sm:$0xff]
          %v2329 = vld [vmem:[#allocation8 + $0x48] sm:$0xff]
          %v2330 = vld [vmem:[#allocation8 + $0x50] sm:$0xff]
          %v2331 = vld [vmem:[#allocation8 + $0x58] sm:$0xff]
          %v2332 = vld [vmem:[#allocation8 + $0x60] sm:$0xff]
          %v2333 = vld [vmem:[#allocation8 + $0x68] sm:$0xff]
          %v2334 = vld [vmem:[#allocation8 + $0x70] sm:$0xff]
          %v2335 = vld [vmem:[#allocation8 + $0x78] sm:$0xff]
          %v2336 = vld [vmem:[#allocation8 + $0x80] sm:$0xff]
          %v2337 = vld [vmem:[#allocation8 + $0x88] sm:$0xff]
          %v2338 = vld [vmem:[#allocation8 + $0x90] sm:$0xff]
          %v2339 = vld [vmem:[#allocation8 + $0x98] sm:$0xff]
          %v2340 = vld [vmem:[#allocation8 + $0xa0] sm:$0xff]
          %v2341 = vld [vmem:[#allocation8 + $0xa8] sm:$0xff]
          %v2342 = vld [vmem:[#allocation8 + $0xb0] sm:$0xff]
          %v2343 = vld [vmem:[#allocation8 + $0xb8] sm:$0xff]
          %v2344 = vld [vmem:[#allocation8 + $0xc0] sm:$0xff]
          %v2345 = vld [vmem:[#allocation8 + $0xc8] sm:$0xff]
          %v2346 = vld [vmem:[#allocation8 + $0xd0] sm:$0xff]
          %v2347 = vld [vmem:[#allocation8 + $0xd8] sm:$0xff]
          %v2348 = vld [vmem:[#allocation8 + $0xe0] sm:$0xff]
          %v2349 = vld [vmem:[#allocation8 + $0xe8] sm:$0xff]
          %v2350 = vld [vmem:[#allocation8 + $0xf0] sm:$0xff]
          %v2351 = vld [vmem:[#allocation8 + $0xf8] sm:$0xff]
          %v2352 = vld [vmem:[#allocation8 + $0x100] sm:$0xff]
          %v2353 = vld [vmem:[#allocation8 + $0x108] sm:$0xff]
          %v2354 = vld [vmem:[#allocation8 + $0x110] sm:$0xff]
          %v2355 = vld [vmem:[#allocation8 + $0x118] sm:$0xff]
          %v2356 = vld [vmem:[#allocation8 + $0x120] sm:$0xff]
          %v2357 = vld [vmem:[#allocation8 + $0x128] sm:$0xff]
          %v2358 = vld [vmem:[#allocation8 + $0x130] sm:$0xff]
          %v2359 = vld [vmem:[#allocation8 + $0x138] sm:$0xff]
          %v2360 = vld [vmem:[#allocation8 + $0x140] sm:$0xff]
          %v2361 = vld [vmem:[#allocation8 + $0x148] sm:$0xff]
          %v2362 = vld [vmem:[#allocation8 + $0x150] sm:$0xff]
          %v2363 = vld [vmem:[#allocation8 + $0x158] sm:$0xff]
          %v2364 = vld [vmem:[#allocation8 + $0x160] sm:$0xff]
          %v2365 = vld [vmem:[#allocation8 + $0x168] sm:$0xff]
          %v2366 = vld [vmem:[#allocation8 + $0x170] sm:$0xff]
          %v2367 = vld [vmem:[#allocation8 + $0x178] sm:$0xff]
          %v2368 = vld [vmem:[#allocation8 + $0x180] sm:$0xff]
          %v2369 = vld [vmem:[#allocation8 + $0x188] sm:$0xff]
          %v2370 = vld [vmem:[#allocation8 + $0x190] sm:$0xff]
          %v2371 = vld [vmem:[#allocation8 + $0x198] sm:$0xff]
          %v2372 = vld [vmem:[#allocation8 + $0x1a0] sm:$0xff]
          %v2373 = vld [vmem:[#allocation8 + $0x1a8] sm:$0xff]
          %v2374 = vld [vmem:[#allocation8 + $0x1b0] sm:$0xff]
          %v2375 = vld [vmem:[#allocation8 + $0x1b8] sm:$0xff]
          %v2376 = vld [vmem:[#allocation8 + $0x1c0] sm:$0xff]
          %v2377 = vld [vmem:[#allocation8 + $0x1c8] sm:$0xff]
          %v2378 = vld [vmem:[#allocation8 + $0x1d0] sm:$0xff]
          %v2379 = vld [vmem:[#allocation8 + $0x1d8] sm:$0xff]
          %v2380 = vld [vmem:[#allocation8 + $0x1e0] sm:$0xff]
          %v2381 = vld [vmem:[#allocation8 + $0x1e8] sm:$0xff]
          %v2382 = vld [vmem:[#allocation8 + $0x1f0] sm:$0xff]
          %v2383 = vld [vmem:[#allocation8 + $0x1f8] sm:$0xff]
          %v2384 = vld [vmem:[#allocation8 + $0x200] sm:$0xff]
          %v2385 = vld [vmem:[#allocation8 + $0x208] sm:$0xff]
          %v2386 = vld [vmem:[#allocation8 + $0x210] sm:$0xff]
          %v2387 = vld [vmem:[#allocation8 + $0x218] sm:$0xff]
          %v2388 = vld [vmem:[#allocation8 + $0x220] sm:$0xff]
          %v2389 = vld [vmem:[#allocation8 + $0x228] sm:$0xff]
          %v2390 = vld [vmem:[#allocation8 + $0x230] sm:$0xff]
          %v2391 = vld [vmem:[#allocation8 + $0x238] sm:$0xff]
          %v2392 = vld [vmem:[#allocation8 + $0x240] sm:$0xff]
          %v2393 = vld [vmem:[#allocation8 + $0x248] sm:$0xff]
          %v2394 = vld [vmem:[#allocation8 + $0x250] sm:$0xff]
          %v2395 = vld [vmem:[#allocation8 + $0x258] sm:$0xff]
          %v2396 = vld [vmem:[#allocation8 + $0x260] sm:$0xff]
          %v2397 = vld [vmem:[#allocation8 + $0x268] sm:$0xff]
          %v2398 = vld [vmem:[#allocation8 + $0x270] sm:$0xff]
          %v2399 = vld [vmem:[#allocation8 + $0x278] sm:$0xff]
          %v2400 = vld [vmem:[#allocation8 + $0x280] sm:$0xff]
          %v2401 = vld [vmem:[#allocation8 + $0x288] sm:$0xff]
          %v2402 = vld [vmem:[#allocation8 + $0x290] sm:$0xff]
          %v2403 = vld [vmem:[#allocation8 + $0x298] sm:$0xff]
          %v2404 = vld [vmem:[#allocation8 + $0x2a0] sm:$0xff]
          %v2405 = vld [vmem:[#allocation8 + $0x2a8] sm:$0xff]
          %v2406 = vld [vmem:[#allocation8 + $0x2b0] sm:$0xff]
          %v2407 = vld [vmem:[#allocation8 + $0x2b8] sm:$0xff]
          %v2408 = vld [vmem:[#allocation8 + $0x2c0] sm:$0xff]
          %v2409 = vld [vmem:[#allocation8 + $0x2c8] sm:$0xff]
          %v2410 = vld [vmem:[#allocation8 + $0x2d0] sm:$0xff]
          %v2411 = vld [vmem:[#allocation8 + $0x2d8] sm:$0xff]
          %v2412 = vld [vmem:[#allocation8 + $0x2e0] sm:$0xff]
          %v2413 = vld [vmem:[#allocation8 + $0x2e8] sm:$0xff]
          %v2414 = vld [vmem:[#allocation8 + $0x2f0] sm:$0xff]
          %v2415 = vld [vmem:[#allocation8 + $0x2f8] sm:$0xff]
          %v2416 = vld [vmem:[#allocation8 + $0x300] sm:$0xff]
          %v2417 = vld [vmem:[#allocation8 + $0x308] sm:$0xff]
          %v2418 = vld [vmem:[#allocation8 + $0x310] sm:$0xff]
          %v2419 = vld [vmem:[#allocation8 + $0x318] sm:$0xff]
          %v2420 = vld [vmem:[#allocation8 + $0x320] sm:$0xff]
          %v2421 = vld [vmem:[#allocation8 + $0x328] sm:$0xff]
          %v2422 = vld [vmem:[#allocation8 + $0x330] sm:$0xff]
          %v2423 = vld [vmem:[#allocation8 + $0x338] sm:$0xff]
          %v2424 = vld [vmem:[#allocation8 + $0x340] sm:$0xff]
          %v2425 = vld [vmem:[#allocation8 + $0x348] sm:$0xff]
          %v2426 = vld [vmem:[#allocation8 + $0x350] sm:$0xff]
          %v2427 = vld [vmem:[#allocation8 + $0x358] sm:$0xff]
          %v2428 = vld [vmem:[#allocation8 + $0x360] sm:$0xff]
          %v2429 = vld [vmem:[#allocation8 + $0x368] sm:$0xff]
          %v2430 = vld [vmem:[#allocation8 + $0x370] sm:$0xff]
          %v2431 = vld [vmem:[#allocation8 + $0x378] sm:$0xff]
          %v2432 = vld [vmem:[#allocation8 + $0x380] sm:$0xff]
          %v2433 = vld [vmem:[#allocation8 + $0x388] sm:$0xff]
          %v2434 = vld [vmem:[#allocation8 + $0x390] sm:$0xff]
          %v2435 = vld [vmem:[#allocation8 + $0x398] sm:$0xff]
          %v2436 = vld [vmem:[#allocation8 + $0x3a0] sm:$0xff]
          %v2437 = vld [vmem:[#allocation8 + $0x3a8] sm:$0xff]
          %v2438 = vld [vmem:[#allocation8 + $0x3b0] sm:$0xff]
          %v2439 = vld [vmem:[#allocation8 + $0x3b8] sm:$0xff]
          %v2440 = vld [vmem:[#allocation8 + $0x3c0] sm:$0xff]
          %v2441 = vld [vmem:[#allocation8 + $0x3c8] sm:$0xff]
          %v2442 = vld [vmem:[#allocation8 + $0x3d0] sm:$0xff]
          %v2443 = vld [vmem:[#allocation8 + $0x3d8] sm:$0xff]
          %v2444 = vld [vmem:[#allocation8 + $0x3e0] sm:$0xff]
          %v2445 = vld [vmem:[#allocation8 + $0x3e8] sm:$0xff]
          %v2446 = vld [vmem:[#allocation8 + $0x3f0] sm:$0xff]
          %v2447 = vld [vmem:[#allocation8 + $0x3f8] sm:$0xff]
          %v2448 = vld [vmem:[#allocation9] sm:$0x1]
          %v2450 = vlaneseq
          %v2451 = vshrl.u32 %v2450, 7
          %v2452 = vsub.s32 0, %v2451
          %v2453 = vrot.slane %v2448, %v2452
          %v2457 = vcombine.high %v2318, %v2318
          %v2459 = vunpack.c.l.s4 1983009808
          %v2460 = vunpack.c.0.s8 %v2459
          %v2461 = vlaneseq
          %v2462 = vshrl.u32 %v2461, 7
          %v2463 = vsub.s32 %v2460, %v2462
          %v2464 = vrot.slane %v2318, %v2463
          %v2466 = vunpack.c.l.s4 1983009808
          %v2467 = vunpack.c.0.s8 %v2466
          %v2468 = vlaneseq
          %v2469 = vshrl.u32 %v2468, 7
          %v2470 = vsub.s32 %v2467, %v2469
          %v2471 = vrot.slane %v2457, %v2470
          %v2472 = vcombine.high %v2464, %v2464
          %v2473 = vcombine.high %v2471, %v2471
          %v2474 = vcombine.high %v2319, %v2319
          %v2476 = vunpack.c.l.s4 1983009808
          %v2477 = vunpack.c.0.s8 %v2476
          %v2478 = vlaneseq
          %v2479 = vshrl.u32 %v2478, 7
          %v2480 = vsub.s32 %v2477, %v2479
          %v2481 = vrot.slane %v2319, %v2480
          %v2483 = vunpack.c.l.s4 1983009808
          %v2484 = vunpack.c.0.s8 %v2483
          %v2485 = vlaneseq
          %v2486 = vshrl.u32 %v2485, 7
          %v2487 = vsub.s32 %v2484, %v2486
          %v2488 = vrot.slane %v2474, %v2487
          %v2489 = vcombine.high %v2481, %v2481
          %v2490 = vcombine.high %v2488, %v2488
          %2499 = vmatprep.subr.mxu0 0.0
          %2500 = vmatpush1.msra.mxu0 %v2320
          %2501 = vmatprep.subr.mxu0 0.0
          %2502 = vmatpush1.msra.mxu0 %v2321
          %2503 = vmatprep.subr.mxu0 0.0
          %2504 = vmatpush1.msra.mxu0 %v2322
          %2505 = vmatprep.subr.mxu0 0.0
          %2506 = vmatpush1.msra.mxu0 %v2323
          %2507 = vmatprep.subr.mxu0 0.0
          %2508 = vmatpush1.msra.mxu0 %v2324
          %2509 = vmatprep.subr.mxu0 0.0
          %2510 = vmatpush1.msra.mxu0 %v2325
          %2511 = vmatprep.subr.mxu0 0.0
          %2512 = vmatpush1.msra.mxu0 %v2326
          %2513 = vmatprep.subr.mxu0 0.0
          %2514 = vmatpush1.msra.mxu0 %v2327
          %2515 = vmatprep.subr.mxu0 0.0
          %2516 = vmatpush1.msra.mxu0 %v2328
          %2517 = vmatprep.subr.mxu0 0.0
          %2518 = vmatpush1.msra.mxu0 %v2329
          %2519 = vmatprep.subr.mxu0 0.0
          %2520 = vmatpush1.msra.mxu0 %v2330
          %2521 = vmatprep.subr.mxu0 0.0
          %2522 = vmatpush1.msra.mxu0 %v2331
          %2523 = vmatprep.subr.mxu0 0.0
          %2524 = vmatpush1.msra.mxu0 %v2332
          %2525 = vmatprep.subr.mxu0 0.0
          %2526 = vmatpush1.msra.mxu0 %v2333
          %2527 = vmatprep.subr.mxu0 0.0
          %2528 = vmatpush1.msra.mxu0 %v2334
          %2529 = vmatprep.subr.mxu0 0.0
          %2530 = vmatpush1.msra.mxu0 %v2335
          %2531 = vmatprep.subr.mxu0 0.0
          %2532 = vmatpush1.msra.mxu0 %v2336
          %2533 = vmatprep.subr.mxu0 0.0
          %2534 = vmatpush1.msra.mxu0 %v2337
          %2535 = vmatprep.subr.mxu0 0.0
          %2536 = vmatpush1.msra.mxu0 %v2338
          %2537 = vmatprep.subr.mxu0 0.0
          %2538 = vmatpush1.msra.mxu0 %v2339
          %2539 = vmatprep.subr.mxu0 0.0
          %2540 = vmatpush1.msra.mxu0 %v2340
          %2541 = vmatprep.subr.mxu0 0.0
          %2542 = vmatpush1.msra.mxu0 %v2341
          %2543 = vmatprep.subr.mxu0 0.0
          %2544 = vmatpush1.msra.mxu0 %v2342
          %2545 = vmatprep.subr.mxu0 0.0
          %2546 = vmatpush1.msra.mxu0 %v2343
          %2547 = vmatprep.subr.mxu0 0.0
          %2548 = vmatpush1.msra.mxu0 %v2344
          %2549 = vmatprep.subr.mxu0 0.0
          %2550 = vmatpush1.msra.mxu0 %v2345
          %2551 = vmatprep.subr.mxu0 0.0
          %2552 = vmatpush1.msra.mxu0 %v2346
          %2553 = vmatprep.subr.mxu0 0.0
          %2554 = vmatpush1.msra.mxu0 %v2347
          %2555 = vmatprep.subr.mxu0 0.0
          %2556 = vmatpush1.msra.mxu0 %v2348
          %2557 = vmatprep.subr.mxu0 0.0
          %2558 = vmatpush1.msra.mxu0 %v2349
          %2559 = vmatprep.subr.mxu0 0.0
          %2560 = vmatpush1.msra.mxu0 %v2350
          %2561 = vmatprep.subr.mxu0 0.0
          %2562 = vmatpush1.msra.mxu0 %v2351
          %2563 = vmatprep.mubr.f32.mxu0 %v2472
          %2564 = vmatmul.mubr.f32.gmra.mrb[0].mxu0 %v2464
          %v2565 = vpop.f32.mrb[0].mxu0
          %v2566 = vadd.f32 %v2453, %v2565
          %v2567 = vpop.f32.mrb[0].mxu0
          %2568 = vdwg.mxu0
          %2569 = vmatprep.subr.mxu0 0.0
          %2570 = vmatpush1.msra.mxu0 %v2352
          %2571 = vmatprep.subr.mxu0 0.0
          %2572 = vmatpush1.msra.mxu0 %v2353
          %2573 = vmatprep.subr.mxu0 0.0
          %2574 = vmatpush1.msra.mxu0 %v2354
          %2575 = vmatprep.subr.mxu0 0.0
          %2576 = vmatpush1.msra.mxu0 %v2355
          %2577 = vmatprep.subr.mxu0 0.0
          %2578 = vmatpush1.msra.mxu0 %v2356
          %2579 = vmatprep.subr.mxu0 0.0
          %2580 = vmatpush1.msra.mxu0 %v2357
          %2581 = vmatprep.subr.mxu0 0.0
          %2582 = vmatpush1.msra.mxu0 %v2358
          %2583 = vmatprep.subr.mxu0 0.0
          %2584 = vmatpush1.msra.mxu0 %v2359
          %2585 = vmatprep.subr.mxu0 0.0
          %2586 = vmatpush1.msra.mxu0 %v2360
          %2587 = vmatprep.subr.mxu0 0.0
          %2588 = vmatpush1.msra.mxu0 %v2361
          %2589 = vmatprep.subr.mxu0 0.0
          %2590 = vmatpush1.msra.mxu0 %v2362
          %2591 = vmatprep.subr.mxu0 0.0
          %2592 = vmatpush1.msra.mxu0 %v2363
          %2593 = vmatprep.subr.mxu0 0.0
          %2594 = vmatpush1.msra.mxu0 %v2364
          %2595 = vmatprep.subr.mxu0 0.0
          %2596 = vmatpush1.msra.mxu0 %v2365
          %2597 = vmatprep.subr.mxu0 0.0
          %2598 = vmatpush1.msra.mxu0 %v2366
          %2599 = vmatprep.subr.mxu0 0.0
          %2600 = vmatpush1.msra.mxu0 %v2367
          %2601 = vmatprep.subr.mxu0 0.0
          %2602 = vmatpush1.msra.mxu0 %v2368
          %2603 = vmatprep.subr.mxu0 0.0
          %2604 = vmatpush1.msra.mxu0 %v2369
          %2605 = vmatprep.subr.mxu0 0.0
          %2606 = vmatpush1.msra.mxu0 %v2370
          %2607 = vmatprep.subr.mxu0 0.0
          %2608 = vmatpush1.msra.mxu0 %v2371
          %2609 = vmatprep.subr.mxu0 0.0
          %2610 = vmatpush1.msra.mxu0 %v2372
          %2611 = vmatprep.subr.mxu0 0.0
          %2612 = vmatpush1.msra.mxu0 %v2373
          %2613 = vmatprep.subr.mxu0 0.0
          %2614 = vmatpush1.msra.mxu0 %v2374
          %2615 = vmatprep.subr.mxu0 0.0
          %2616 = vmatpush1.msra.mxu0 %v2375
          %2617 = vmatprep.subr.mxu0 0.0
          %2618 = vmatpush1.msra.mxu0 %v2376
          %2619 = vmatprep.subr.mxu0 0.0
          %2620 = vmatpush1.msra.mxu0 %v2377
          %2621 = vmatprep.subr.mxu0 0.0
          %2622 = vmatpush1.msra.mxu0 %v2378
          %2623 = vmatprep.subr.mxu0 0.0
          %2624 = vmatpush1.msra.mxu0 %v2379
          %2625 = vmatprep.subr.mxu0 0.0
          %2626 = vmatpush1.msra.mxu0 %v2380
          %2627 = vmatprep.subr.mxu0 0.0
          %2628 = vmatpush1.msra.mxu0 %v2381
          %2629 = vmatprep.subr.mxu0 0.0
          %2630 = vmatpush1.msra.mxu0 %v2382
          %2631 = vmatprep.subr.mxu0 0.0
          %2632 = vmatpush1.msra.mxu0 %v2383
          %2633 = vmatprep.mubr.f32.mxu0 %v2473
          %2634 = vmatmul.mubr.f32.gmra.mrb[0].mxu0 %v2471
          %v2635 = vpop.f32.mrb[0].mxu0
          %v2636 = vadd.f32 %v2566, %v2635
          %v2637 = vpop.f32.mrb[0].mxu0
          %2638 = vdwg.mxu0
          %2639 = vmatprep.subr.mxu0 0.0
          %2640 = vmatpush1.msra.mxu0 %v2384
          %2641 = vmatprep.subr.mxu0 0.0
          %2642 = vmatpush1.msra.mxu0 %v2385
          %2643 = vmatprep.subr.mxu0 0.0
          %2644 = vmatpush1.msra.mxu0 %v2386
          %2645 = vmatprep.subr.mxu0 0.0
          %2646 = vmatpush1.msra.mxu0 %v2387
          %2647 = vmatprep.subr.mxu0 0.0
          %2648 = vmatpush1.msra.mxu0 %v2388
          %2649 = vmatprep.subr.mxu0 0.0
          %2650 = vmatpush1.msra.mxu0 %v2389
          %2651 = vmatprep.subr.mxu0 0.0
          %2652 = vmatpush1.msra.mxu0 %v2390
          %2653 = vmatprep.subr.mxu0 0.0
          %2654 = vmatpush1.msra.mxu0 %v2391
          %2655 = vmatprep.subr.mxu0 0.0
          %2656 = vmatpush1.msra.mxu0 %v2392
          %2657 = vmatprep.subr.mxu0 0.0
          %2658 = vmatpush1.msra.mxu0 %v2393
          %2659 = vmatprep.subr.mxu0 0.0
          %2660 = vmatpush1.msra.mxu0 %v2394
          %2661 = vmatprep.subr.mxu0 0.0
          %2662 = vmatpush1.msra.mxu0 %v2395
          %2663 = vmatprep.subr.mxu0 0.0
          %2664 = vmatpush1.msra.mxu0 %v2396
          %2665 = vmatprep.subr.mxu0 0.0
          %2666 = vmatpush1.msra.mxu0 %v2397
          %2667 = vmatprep.subr.mxu0 0.0
          %2668 = vmatpush1.msra.mxu0 %v2398
          %2669 = vmatprep.subr.mxu0 0.0
          %2670 = vmatpush1.msra.mxu0 %v2399
          %2671 = vmatprep.subr.mxu0 0.0
          %2672 = vmatpush1.msra.mxu0 %v2400
          %2673 = vmatprep.subr.mxu0 0.0
          %2674 = vmatpush1.msra.mxu0 %v2401
          %2675 = vmatprep.subr.mxu0 0.0
          %2676 = vmatpush1.msra.mxu0 %v2402
          %2677 = vmatprep.subr.mxu0 0.0
          %2678 = vmatpush1.msra.mxu0 %v2403
          %2679 = vmatprep.subr.mxu0 0.0
          %2680 = vmatpush1.msra.mxu0 %v2404
          %2681 = vmatprep.subr.mxu0 0.0
          %2682 = vmatpush1.msra.mxu0 %v2405
          %2683 = vmatprep.subr.mxu0 0.0
          %2684 = vmatpush1.msra.mxu0 %v2406
          %2685 = vmatprep.subr.mxu0 0.0
          %2686 = vmatpush1.msra.mxu0 %v2407
          %2687 = vmatprep.subr.mxu0 0.0
          %2688 = vmatpush1.msra.mxu0 %v2408
          %2689 = vmatprep.subr.mxu0 0.0
          %2690 = vmatpush1.msra.mxu0 %v2409
          %2691 = vmatprep.subr.mxu0 0.0
          %2692 = vmatpush1.msra.mxu0 %v2410
          %2693 = vmatprep.subr.mxu0 0.0
          %2694 = vmatpush1.msra.mxu0 %v2411
          %2695 = vmatprep.subr.mxu0 0.0
          %2696 = vmatpush1.msra.mxu0 %v2412
          %2697 = vmatprep.subr.mxu0 0.0
          %2698 = vmatpush1.msra.mxu0 %v2413
          %2699 = vmatprep.subr.mxu0 0.0
          %2700 = vmatpush1.msra.mxu0 %v2414
          %2701 = vmatprep.subr.mxu0 0.0
          %2702 = vmatpush1.msra.mxu0 %v2415
          %2703 = vmatprep.mubr.f32.mxu0 %v2489
          %2704 = vmatmul.mubr.f32.gmra.mrb[0].mxu0 %v2481
          %v2705 = vpop.f32.mrb[0].mxu0
          %v2706 = vadd.f32 %v2636, %v2705
          %v2707 = vpop.f32.mrb[0].mxu0
          %2708 = vdwg.mxu0
          %2709 = vmatprep.subr.mxu0 0.0
          %2710 = vmatpush1.msra.mxu0 %v2416
          %2711 = vmatprep.subr.mxu0 0.0
          %2712 = vmatpush1.msra.mxu0 %v2417
          %2713 = vmatprep.subr.mxu0 0.0
          %2714 = vmatpush1.msra.mxu0 %v2418
          %2715 = vmatprep.subr.mxu0 0.0
          %2716 = vmatpush1.msra.mxu0 %v2419
          %2717 = vmatprep.subr.mxu0 0.0
          %2718 = vmatpush1.msra.mxu0 %v2420
          %2719 = vmatprep.subr.mxu0 0.0
          %2720 = vmatpush1.msra.mxu0 %v2421
          %2721 = vmatprep.subr.mxu0 0.0
          %2722 = vmatpush1.msra.mxu0 %v2422
          %2723 = vmatprep.subr.mxu0 0.0
          %2724 = vmatpush1.msra.mxu0 %v2423
          %2725 = vmatprep.subr.mxu0 0.0
          %2726 = vmatpush1.msra.mxu0 %v2424
          %2727 = vmatprep.subr.mxu0 0.0
          %2728 = vmatpush1.msra.mxu0 %v2425
          %2729 = vmatprep.subr.mxu0 0.0
          %2730 = vmatpush1.msra.mxu0 %v2426
          %2731 = vmatprep.subr.mxu0 0.0
          %2732 = vmatpush1.msra.mxu0 %v2427
          %2733 = vmatprep.subr.mxu0 0.0
          %2734 = vmatpush1.msra.mxu0 %v2428
          %2735 = vmatprep.subr.mxu0 0.0
          %2736 = vmatpush1.msra.mxu0 %v2429
          %2737 = vmatprep.subr.mxu0 0.0
          %2738 = vmatpush1.msra.mxu0 %v2430
          %2739 = vmatprep.subr.mxu0 0.0
          %2740 = vmatpush1.msra.mxu0 %v2431
          %2741 = vmatprep.subr.mxu0 0.0
          %2742 = vmatpush1.msra.mxu0 %v2432
          %2743 = vmatprep.subr.mxu0 0.0
          %2744 = vmatpush1.msra.mxu0 %v2433
          %2745 = vmatprep.subr.mxu0 0.0
          %2746 = vmatpush1.msra.mxu0 %v2434
          %2747 = vmatprep.subr.mxu0 0.0
          %2748 = vmatpush1.msra.mxu0 %v2435
          %2749 = vmatprep.subr.mxu0 0.0
          %2750 = vmatpush1.msra.mxu0 %v2436
          %2751 = vmatprep.subr.mxu0 0.0
          %2752 = vmatpush1.msra.mxu0 %v2437
          %2753 = vmatprep.subr.mxu0 0.0
          %2754 = vmatpush1.msra.mxu0 %v2438
          %2755 = vmatprep.subr.mxu0 0.0
          %2756 = vmatpush1.msra.mxu0 %v2439
          %2757 = vmatprep.subr.mxu0 0.0
          %2758 = vmatpush1.msra.mxu0 %v2440
          %2759 = vmatprep.subr.mxu0 0.0
          %2760 = vmatpush1.msra.mxu0 %v2441
          %2761 = vmatprep.subr.mxu0 0.0
          %2762 = vmatpush1.msra.mxu0 %v2442
          %2763 = vmatprep.subr.mxu0 0.0
          %2764 = vmatpush1.msra.mxu0 %v2443
          %2765 = vmatprep.subr.mxu0 0.0
          %2766 = vmatpush1.msra.mxu0 %v2444
          %2767 = vmatprep.subr.mxu0 0.0
          %2768 = vmatpush1.msra.mxu0 %v2445
          %2769 = vmatprep.subr.mxu0 0.0
          %2770 = vmatpush1.msra.mxu0 %v2446
          %2771 = vmatprep.subr.mxu0 0.0
          %2772 = vmatpush1.msra.mxu0 %v2447
          %2773 = vmatprep.mubr.f32.mxu0 %v2490
          %2774 = vmatmul.mubr.f32.gmra.mrb[0].mxu0 %v2488
          %v2775 = vpop.f32.mrb[0].mxu0
          %v2776 = vadd.f32 %v2706, %v2775
          %v2777 = vpop.f32.mrb[0].mxu0
          %2778 = vdwg.mxu0
          %2779 = vst [vmem:[#allocation11] sm:$0x3] %v2776
        $region64: #{my_ensemble_forward.1} parent=39 // pred_fallthru
          _
        // Predicated region
        $region65: #{my_ensemble_forward.1} parent=39 // pred_check
          %p2780 = pneg %p150
        $region66: #{my_ensemble_forward.1} parent=39 // pred_check_branch
          %2782 = sbr.rel (%p2780) target = $region68
        $region67: #{my_ensemble_forward.1} parent=39 // pred_region
          %s2784 = ssub.s32 32, 32
          %2785 = vsyncadd [#allocation5], %s2784
          %s2787 = sshll.u32 [#allocation11], 4
          %s2788 = int_to_ptr.vmem [resolvable:$true] %s2787
          %2790 = dma.vmem_to_hbm [thread:$0]  %s2788, 32, %s5, [#allocation5]
        $region68: #{my_ensemble_forward.1} parent=39 // pred_fallthru
          _
        // Predicated region
        $region69: #{my_ensemble_forward.1} parent=39 // pred_check
          %p2791 = pneg %p150
        $region70: #{my_ensemble_forward.1} parent=39 // pred_check_branch
          %2793 = sbr.rel (%p2791) target = $region72
        $region71: #{my_ensemble_forward.1} parent=39 // pred_region
          %2794 = dma.done [#allocation5], 32
        $region72: #{my_ensemble_forward.1} parent=39 // pred_fallthru
          _
      $region40: #{my_ensemble_forward.1} parent=5 // pred_fallthru
        _
      %p2795 = scmp.le.s32.totalorder 2, %s17
      // Predicated region
      $region73: #{my_ensemble_forward.1} parent=5 // pred_check
        %p2796 = pneg %p2795
      $region74: #{my_ensemble_forward.1} parent=5 // pred_check_branch
        %2798 = sbr.rel (%p2796) target = $region76
      $region75: #{my_ensemble_forward.1} parent=5 // pred_region
        %s2799 = ssub.s32 %s17, 2
      $region76: #{my_ensemble_forward.1} parent=5 // pred_fallthru
        _
    $region6: #{my_ensemble_forward.1} parent=1 // loop_footer
      %s21 = sadd.s32 1, %s17
    $region7: #{my_ensemble_forward.1} parent=1 // loop_footer_branch
      %16 = sbr.rel target = $region3
    $region8: #{my_ensemble_forward.1} parent=1 // loop_exit
      _
    %2800 = vsyncpa [#allocation4], 1
    %s2801 = scalar_lea.sflag [#allocation4], 1
    %2802 = vsyncpa %s2801, 1
    %2803 = vsyncpa [#allocation7], 1
    %2804 = vsyncpa [#allocation10], 1
    %2805 = vsyncpa [#allocation5], 1
    %s2806 = scalar_lea.sflag [#allocation5], 1
    %2807 = vsyncpa %s2806, 1

</llo_original>
